<compile_context>
chip_gen: v7x
topology: tpu7x:2x2x1
jax: 0.10.0
libtpu: 0.0.40
codegen_flags: <defaults>
</compile_context>

<pallas_src>
import functools

import numpy as np
import jax
import jax.numpy as jnp
from jax.experimental import pallas as pl
from jax.experimental.pallas import tpu as pltpu

_BN_EPS = 1e-5
_VMEM_LIMIT = 32 * 1024 * 1024
_TAPS = tuple((dh, dw) for dh in (-1, 0, 1) for dw in (-1, 0, 1))   # row-major 3x3


# ------------------------------------------------------------------
# Host-side (numpy) constants — built once, outside the jit
# ------------------------------------------------------------------
def _tap_masks_np(H, W, n):
    """(9, n*H*W) f32; row t is 1 where 3x3 tap t reads a valid (non-padded)
    pixel of the SAME sample.  Masks tile per-sample, so lane rolls on the
    batch-folded axis never leak across samples (leaks land on masked lanes)."""
    hw = H * W
    p = np.arange(hw)
    h, w = p // W, p % W
    rows = []
    for dh, dw in _TAPS:
        valid = (h + dh >= 0) & (h + dh < H) & (w + dw >= 0) & (w + dw < W)
        rows.append(np.tile(valid.astype(np.float32), n))
    return np.stack(rows, axis=0)


def _pool_matrix_np(H, W, n):
    """(n*H*W, n*Ho*Wo) f32 block-diagonal AvgPool2d(2,2) matrix (0 / 0.25)."""
    Ho, Wo = H // 2, W // 2
    hw, howo = H * W, Ho * Wo
    P = np.zeros((n * hw, n * howo), np.float32)
    for s in range(n):
        for p in range(hw):
            h, w = p // W, p % W
            P[s * hw + p, s * howo + (h // 2) * Wo + (w // 2)] = 0.25
    return P


# ------------------------------------------------------------------
# One fused pallas_call per Dense_Block (layers + optional transition)
# ------------------------------------------------------------------
def _dense_block(x, block, H, W):
    c0, L = x.shape                       # (channels, batch*H*W)
    layers = block["layers"]
    iters = len(layers)
    g = layers[0]["w"].shape[0]
    trans = block["trans"]
    c_final = c0 + iters * g
    c_last = c0 + max(iters - 1, 0) * g

    # roll amount so rolled[q] == a[q + dh*W + dw]   (pltpu.roll == jnp.roll)
    shifts = tuple(int((-(dh * W + dw)) % L) for dh, dw in _TAPS)

    inputs = [x, block["masks"]]
    for lp in layers:
        inputs += [lp["scale"], lp["bias"], lp["w"]]
    if trans is not None:
        inputs += [trans["scale"], trans["bias"], trans["w"], block["pool"]]
        cout = trans["w"].shape[0]
        out_cols = block["pool"].shape[1]
        out_shape = (cout, out_cols)
    else:
        out_shape = (c_final, L)
    n_in = len(inputs)

    def kernel(*refs):
        x_ref, m_ref = refs[0], refs[1]
        o_ref = refs[n_in]
        feat = refs[n_in + 1]             # (c_final, L) VMEM: dense feature map
        stack = refs[n_in + 2]            # (9*c_last, L) VMEM: shifted-tap stack

        feat[0:c0, :] = x_ref[...]
        pidx = 2
        cin = c0
        for _ in range(iters):
            s = refs[pidx][...]
            b = refs[pidx + 1][...]
            wf = refs[pidx + 2][...]      # (g, 9*cin)
            pidx += 3
            a = jnp.maximum(feat[0:cin, :] * s + b, 0.0)          # fused BN + ReLU
            # 9 shifted+masked tap copies (XLU roll + VPU mask), then ONE matmul
            for t in range(9):
                sh = shifts[t]
                if sh == 0:                                        # center tap
                    stack[t * cin:(t + 1) * cin, :] = a
                else:
                    stack[t * cin:(t + 1) * cin, :] = (
                        pltpu.roll(a, sh, axis=1) * m_ref[t:t + 1, :])
            new = jnp.dot(wf, stack[0:9 * cin, :],
                          preferred_element_type=jnp.float32)      # (g, L)
            feat[cin:cin + g, :] = new                             # dense concat (VMEM)
            cin += g

        if trans is not None:
            ts = refs[pidx][...]
            tb = refs[pidx + 1][...]
            tw = refs[pidx + 2][...]                               # (cout, c_final)
            pool = refs[pidx + 3][...]                             # (L, out_cols)
            a = jnp.maximum(feat[...] * ts + tb, 0.0)              # BN + ReLU
            y = jnp.dot(tw, a, preferred_element_type=jnp.float32)            # 1x1 conv
            o_ref[...] = jnp.dot(y, pool, preferred_element_type=jnp.float32)  # avg-pool
        else:
            o_ref[...] = feat[...]

    # Advisory cost estimate.
    flops = 0
    cin = c0
    for _ in range(iters):
        flops += 2 * g * 9 * cin * L + 12 * cin * L
        cin += g
    if trans is not None:
        flops += 2 * cout * c_final * L + 2 * cout * L * out_cols + 3 * c_final * L
    bytes_accessed = 4 * (sum(int(a.size) for a in inputs)
                          + out_shape[0] * out_shape[1])

    return pl.pallas_call(
        kernel,
        out_shape=jax.ShapeDtypeStruct(out_shape, jnp.float32),
        scratch_shapes=[pltpu.VMEM((c_final, L), jnp.float32),
                        pltpu.VMEM((9 * c_last, L), jnp.float32)],
        compiler_params=pltpu.CompilerParams(vmem_limit_bytes=_VMEM_LIMIT),
        cost_estimate=pl.CostEstimate(flops=flops, transcendentals=0,
                                      bytes_accessed=bytes_accessed),
    )(*inputs)


# ------------------------------------------------------------------
# Parameter init (deterministic, synthetic — no checkpoints)
# ------------------------------------------------------------------
def _fold_bn(gamma, beta, mean, var):
    scale = gamma / jnp.sqrt(var + _BN_EPS)
    bias = beta - mean * scale
    return scale, bias


def _init_bn(key, c):
    k1, k2 = jax.random.split(key)
    gamma = 1.0 + 0.1 * jax.random.normal(k1, (c,), jnp.float32)
    beta = 0.1 * jax.random.normal(k2, (c,), jnp.float32)
    return _fold_bn(gamma, beta, jnp.zeros((c,), jnp.float32),
                    jnp.ones((c,), jnp.float32))


def init_params(key, blocks_configs, growth_rate, transition, n, H, W):
    params = []
    h, w = H, W
    for (in_ch, iter_cnt) in blocks_configs:
        block = {"layers": [], "trans": None, "pool": None,
                 "masks": _tap_masks_np(h, w, n)}
        c = in_ch
        for _ in range(iter_cnt):
            key, kbn, kw = jax.random.split(key, 3)
            scale, bias = _init_bn(kbn, c)
            # PyTorch Conv2d layout (cout, cin, kh, kw), He init.
            wt = jax.random.normal(kw, (growth_rate, c, 3, 3), jnp.float32)
            wt = wt * jnp.sqrt(2.0 / (9.0 * c))
            # -> (g, kh, kw, cin) -> (g, 9*cin); tap order (kh,kw) matches _TAPS,
            # channel-minor matches the kernel's stack layout.
            w_flat = jnp.transpose(wt, (0, 2, 3, 1)).reshape(growth_rate, 9 * c)
            block["layers"].append({"scale": scale.reshape(c, 1),
                                    "bias": bias.reshape(c, 1),
                                    "w": w_flat})
            c += growth_rate
        if transition:
            key, kbn, kw = jax.random.split(key, 3)
            scale, bias = _init_bn(kbn, c)
            c_out = c // 2
            wt = jax.random.normal(kw, (c_out, c), jnp.float32) * jnp.sqrt(2.0 / c)
            block["trans"] = {"scale": scale.reshape(c, 1),
                              "bias": bias.reshape(c, 1),
                              "w": wt}
            block["pool"] = _pool_matrix_np(h, w, n)
            h, w = h // 2, w // 2
        params.append(block)
    return params


# ------------------------------------------------------------------
# Forward pass (mirrors Make_Blocks.forward / nn.Sequential of Dense_Block)
# ------------------------------------------------------------------
@jax.jit
def make_blocks_forward(x_nchw, params):
    n, c, h, w = x_nchw.shape
    # channel-major, batch*spatial folded onto the lane axis: (C, N*H*W)
    x = jnp.transpose(x_nchw.astype(jnp.float32), (1, 0, 2, 3)).reshape(c, n * h * w)
    for block in params:
        x = _dense_block(x, block, h, w)
        if block["trans"] is not None:
            h, w = h // 2, w // 2
    return jnp.transpose(x.reshape(x.shape[0], n, h, w), (1, 0, 2, 3))   # back to NCHW


if __name__ == "__main__":
    key = jax.random.PRNGKey(0)
    kp, kx = jax.random.split(key)

    growth_rate = 4
    transition = True
    # (in_channels, iter_cnt) per Dense_Block; block 2's in_channels matches
    # block 1's output: (4 + 2*4) // 2 = 6.
    blocks_configs = ((4, 2), (6, 2))
    n, h, w = 2, 16, 16

    params = init_params(kp, blocks_configs, growth_rate, transition, n, h, w)
    x = jax.random.normal(kx, (n, blocks_configs[0][0], h, w), jnp.float32)  # NCHW

    out = make_blocks_forward(x, params)
    out = jax.block_until_ready(out)
    assert out.shape == (2, 7, 4, 4), out.shape
    print("KERNEL_OK")
</pallas_src>

<mosaic_0001>
module attributes {stable_mosaic.version = 11 : i64} {
  func.func @kernel(%arg0: memref<6x128xf32, #tpu.memory_space<vmem>>, %arg1: memref<9x128xf32, #tpu.memory_space<vmem>>, %arg2: memref<6x1xf32, #tpu.memory_space<vmem>>, %arg3: memref<6x1xf32, #tpu.memory_space<vmem>>, %arg4: memref<4x54xf32, #tpu.memory_space<vmem>>, %arg5: memref<10x1xf32, #tpu.memory_space<vmem>>, %arg6: memref<10x1xf32, #tpu.memory_space<vmem>>, %arg7: memref<4x90xf32, #tpu.memory_space<vmem>>, %arg8: memref<14x1xf32, #tpu.memory_space<vmem>>, %arg9: memref<14x1xf32, #tpu.memory_space<vmem>>, %arg10: memref<7x14xf32, #tpu.memory_space<vmem>>, %arg11: memref<128x32xf32, #tpu.memory_space<vmem>>, %arg12: memref<7x32xf32, #tpu.memory_space<vmem>>, %arg13: memref<14x128xf32, #tpu.memory_space<vmem>>, %arg14: memref<90x128xf32, #tpu.memory_space<vmem>>) attributes {dimension_semantics = [], scalar_prefetch = 0 : i64, scratch_operands = 2 : i64, tpu.core_type = #tpu.core_type<tc>} {
    %c0 = arith.constant 0 : index
    %c0_0 = arith.constant 0 : index
    %0 = vector.load %arg0[%c0, %c0_0] : memref<6x128xf32, #tpu.memory_space<vmem>>, vector<6x128xf32>
    %c0_1 = arith.constant 0 : index
    %c0_2 = arith.constant 0 : index
    %1 = vector.load %arg13[%c0_1, %c0_2] : memref<14x128xf32, #tpu.memory_space<vmem>>, vector<6x128xf32>
    tpu.vector_store %arg13[%c0_1, %c0_2], %0 {strides = array<i32>} : memref<14x128xf32, #tpu.memory_space<vmem>>, vector<6x128xf32>,
    %c0_3 = arith.constant 0 : index
    %c0_4 = arith.constant 0 : index
    %2 = vector.load %arg2[%c0_3, %c0_4] : memref<6x1xf32, #tpu.memory_space<vmem>>, vector<6x1xf32>
    %c0_5 = arith.constant 0 : index
    %c0_6 = arith.constant 0 : index
    %3 = vector.load %arg3[%c0_5, %c0_6] : memref<6x1xf32, #tpu.memory_space<vmem>>, vector<6x1xf32>
    %c0_7 = arith.constant 0 : index
    %c0_8 = arith.constant 0 : index
    %4 = vector.load %arg4[%c0_7, %c0_8] : memref<4x54xf32, #tpu.memory_space<vmem>>, vector<4x54xf32>
    %c0_9 = arith.constant 0 : index
    %c0_10 = arith.constant 0 : index
    %5 = vector.load %arg13[%c0_9, %c0_10] : memref<14x128xf32, #tpu.memory_space<vmem>>, vector<6x128xf32>
    %6 = vector.broadcast %2 : vector<6x1xf32> to vector<6x128xf32>
    %7 = arith.mulf %5, %6 : vector<6x128xf32>
    %8 = vector.broadcast %3 : vector<6x1xf32> to vector<6x128xf32>
    %9 = arith.addf %7, %8 : vector<6x128xf32>
    %cst = arith.constant 0.000000e+00 : f32
    %10 = vector.broadcast %cst : f32 to vector<6x128xf32>
    %11 = arith.maximumf %9, %10 : vector<6x128xf32>
    %c9_i32 = arith.constant 9 : i32
    %12 = tpu.dynamic_rotate %11 by %c9_i32 dim 1 : vector<6x128xf32>, i32 -> vector<6x128xf32>
    %c0_11 = arith.constant 0 : index
    %c0_12 = arith.constant 0 : index
    %13 = vector.load %arg1[%c0_11, %c0_12] : memref<9x128xf32, #tpu.memory_space<vmem>>, vector<1x128xf32>
    %14 = vector.broadcast %13 : vector<1x128xf32> to vector<6x128xf32>
    %15 = arith.mulf %12, %14 : vector<6x128xf32>
    %c0_13 = arith.constant 0 : index
    %c0_14 = arith.constant 0 : index
    %16 = vector.load %arg14[%c0_13, %c0_14] : memref<90x128xf32, #tpu.memory_space<vmem>>, vector<6x128xf32>
    tpu.vector_store %arg14[%c0_13, %c0_14], %15 {strides = array<i32>} : memref<90x128xf32, #tpu.memory_space<vmem>>, vector<6x128xf32>,
    %c8_i32 = arith.constant 8 : i32
    %17 = tpu.dynamic_rotate %11 by %c8_i32 dim 1 : vector<6x128xf32>, i32 -> vector<6x128xf32>
    %c1 = arith.constant 1 : index
    %c0_15 = arith.constant 0 : index
    %18 = vector.load %arg1[%c1, %c0_15] : memref<9x128xf32, #tpu.memory_space<vmem>>, vector<1x128xf32>
    %19 = vector.broadcast %18 : vector<1x128xf32> to vector<6x128xf32>
    %20 = arith.mulf %17, %19 : vector<6x128xf32>
    %c6 = arith.constant 6 : index
    %c0_16 = arith.constant 0 : index
    %21 = vector.load %arg14[%c6, %c0_16] : memref<90x128xf32, #tpu.memory_space<vmem>>, vector<6x128xf32>
    tpu.vector_store %arg14[%c6, %c0_16], %20 {strides = array<i32>} : memref<90x128xf32, #tpu.memory_space<vmem>>, vector<6x128xf32>,
    %c7_i32 = arith.constant 7 : i32
    %22 = tpu.dynamic_rotate %11 by %c7_i32 dim 1 : vector<6x128xf32>, i32 -> vector<6x128xf32>
    %c2 = arith.constant 2 : index
    %c0_17 = arith.constant 0 : index
    %23 = vector.load %arg1[%c2, %c0_17] : memref<9x128xf32, #tpu.memory_space<vmem>>, vector<1x128xf32>
    %24 = vector.broadcast %23 : vector<1x128xf32> to vector<6x128xf32>
    %25 = arith.mulf %22, %24 : vector<6x128xf32>
    %c12 = arith.constant 12 : index
    %c0_18 = arith.constant 0 : index
    %26 = vector.load %arg14[%c12, %c0_18] : memref<90x128xf32, #tpu.memory_space<vmem>>, vector<6x128xf32>
    tpu.vector_store %arg14[%c12, %c0_18], %25 {strides = array<i32>} : memref<90x128xf32, #tpu.memory_space<vmem>>, vector<6x128xf32>,
    %c1_i32 = arith.constant 1 : i32
    %27 = tpu.dynamic_rotate %11 by %c1_i32 dim 1 : vector<6x128xf32>, i32 -> vector<6x128xf32>
    %c3 = arith.constant 3 : index
    %c0_19 = arith.constant 0 : index
    %28 = vector.load %arg1[%c3, %c0_19] : memref<9x128xf32, #tpu.memory_space<vmem>>, vector<1x128xf32>
    %29 = vector.broadcast %28 : vector<1x128xf32> to vector<6x128xf32>
    %30 = arith.mulf %27, %29 : vector<6x128xf32>
    %c18 = arith.constant 18 : index
    %c0_20 = arith.constant 0 : index
    %31 = vector.load %arg14[%c18, %c0_20] : memref<90x128xf32, #tpu.memory_space<vmem>>, vector<6x128xf32>
    tpu.vector_store %arg14[%c18, %c0_20], %30 {strides = array<i32>} : memref<90x128xf32, #tpu.memory_space<vmem>>, vector<6x128xf32>,
    %c24 = arith.constant 24 : index
    %c0_21 = arith.constant 0 : index
    %32 = vector.load %arg14[%c24, %c0_21] : memref<90x128xf32, #tpu.memory_space<vmem>>, vector<6x128xf32>
    tpu.vector_store %arg14[%c24, %c0_21], %11 {strides = array<i32>} : memref<90x128xf32, #tpu.memory_space<vmem>>, vector<6x128xf32>,
    %c127_i32 = arith.constant 127 : i32
    %33 = tpu.dynamic_rotate %11 by %c127_i32 dim 1 : vector<6x128xf32>, i32 -> vector<6x128xf32>
    %c5 = arith.constant 5 : index
    %c0_22 = arith.constant 0 : index
    %34 = vector.load %arg1[%c5, %c0_22] : memref<9x128xf32, #tpu.memory_space<vmem>>, vector<1x128xf32>
    %35 = vector.broadcast %34 : vector<1x128xf32> to vector<6x128xf32>
    %36 = arith.mulf %33, %35 : vector<6x128xf32>
    %c30 = arith.constant 30 : index
    %c0_23 = arith.constant 0 : index
    %37 = vector.load %arg14[%c30, %c0_23] : memref<90x128xf32, #tpu.memory_space<vmem>>, vector<6x128xf32>
    tpu.vector_store %arg14[%c30, %c0_23], %36 {strides = array<i32>} : memref<90x128xf32, #tpu.memory_space<vmem>>, vector<6x128xf32>,
    %c121_i32 = arith.constant 121 : i32
    %38 = tpu.dynamic_rotate %11 by %c121_i32 dim 1 : vector<6x128xf32>, i32 -> vector<6x128xf32>
    %c6_24 = arith.constant 6 : index
    %c0_25 = arith.constant 0 : index
    %39 = vector.load %arg1[%c6_24, %c0_25] : memref<9x128xf32, #tpu.memory_space<vmem>>, vector<1x128xf32>
    %40 = vector.broadcast %39 : vector<1x128xf32> to vector<6x128xf32>
    %41 = arith.mulf %38, %40 : vector<6x128xf32>
    %c36 = arith.constant 36 : index
    %c0_26 = arith.constant 0 : index
    %42 = vector.load %arg14[%c36, %c0_26] : memref<90x128xf32, #tpu.memory_space<vmem>>, vector<6x128xf32>
    tpu.vector_store %arg14[%c36, %c0_26], %41 {strides = array<i32>} : memref<90x128xf32, #tpu.memory_space<vmem>>, vector<6x128xf32>,
    %c120_i32 = arith.constant 120 : i32
    %43 = tpu.dynamic_rotate %11 by %c120_i32 dim 1 : vector<6x128xf32>, i32 -> vector<6x128xf32>
    %c7 = arith.constant 7 : index
    %c0_27 = arith.constant 0 : index
    %44 = vector.load %arg1[%c7, %c0_27] : memref<9x128xf32, #tpu.memory_space<vmem>>, vector<1x128xf32>
    %45 = vector.broadcast %44 : vector<1x128xf32> to vector<6x128xf32>
    %46 = arith.mulf %43, %45 : vector<6x128xf32>
    %c42 = arith.constant 42 : index
    %c0_28 = arith.constant 0 : index
    %47 = vector.load %arg14[%c42, %c0_28] : memref<90x128xf32, #tpu.memory_space<vmem>>, vector<6x128xf32>
    tpu.vector_store %arg14[%c42, %c0_28], %46 {strides = array<i32>} : memref<90x128xf32, #tpu.memory_space<vmem>>, vector<6x128xf32>,
    %c119_i32 = arith.constant 119 : i32
    %48 = tpu.dynamic_rotate %11 by %c119_i32 dim 1 : vector<6x128xf32>, i32 -> vector<6x128xf32>
    %c8 = arith.constant 8 : index
    %c0_29 = arith.constant 0 : index
    %49 = vector.load %arg1[%c8, %c0_29] : memref<9x128xf32, #tpu.memory_space<vmem>>, vector<1x128xf32>
    %50 = vector.broadcast %49 : vector<1x128xf32> to vector<6x128xf32>
    %51 = arith.mulf %48, %50 : vector<6x128xf32>
    %c48 = arith.constant 48 : index
    %c0_30 = arith.constant 0 : index
    %52 = vector.load %arg14[%c48, %c0_30] : memref<90x128xf32, #tpu.memory_space<vmem>>, vector<6x128xf32>
    tpu.vector_store %arg14[%c48, %c0_30], %51 {strides = array<i32>} : memref<90x128xf32, #tpu.memory_space<vmem>>, vector<6x128xf32>,
    %c0_31 = arith.constant 0 : index
    %c0_32 = arith.constant 0 : index
    %53 = vector.load %arg14[%c0_31, %c0_32] : memref<90x128xf32, #tpu.memory_space<vmem>>, vector<54x128xf32>
    %cst_33 = arith.constant dense<0.000000e+00> : vector<4x128xf32>
    %54 = tpu.matmul %4, %53, %cst_33 {dimension_numbers = #tpu.dot_dimension_numbers<[1], [0], [0], [1], [0, 0, 1, 1], [], []>} : vector<4x54xf32>, vector<54x128xf32>, vector<4x128xf32> -> vector<4x128xf32>
    %c6_34 = arith.constant 6 : index
    %c0_35 = arith.constant 0 : index
    %55 = vector.load %arg13[%c6_34, %c0_35] : memref<14x128xf32, #tpu.memory_space<vmem>>, vector<4x128xf32>
    tpu.vector_store %arg13[%c6_34, %c0_35], %54 {strides = array<i32>} : memref<14x128xf32, #tpu.memory_space<vmem>>, vector<4x128xf32>,
    %c0_36 = arith.constant 0 : index
    %c0_37 = arith.constant 0 : index
    %56 = vector.load %arg5[%c0_36, %c0_37] : memref<10x1xf32, #tpu.memory_space<vmem>>, vector<10x1xf32>
    %c0_38 = arith.constant 0 : index
    %c0_39 = arith.constant 0 : index
    %57 = vector.load %arg6[%c0_38, %c0_39] : memref<10x1xf32, #tpu.memory_space<vmem>>, vector<10x1xf32>
    %c0_40 = arith.constant 0 : index
    %c0_41 = arith.constant 0 : index
    %58 = vector.load %arg7[%c0_40, %c0_41] : memref<4x90xf32, #tpu.memory_space<vmem>>, vector<4x90xf32>
    %c0_42 = arith.constant 0 : index
    %c0_43 = arith.constant 0 : index
    %59 = vector.load %arg13[%c0_42, %c0_43] : memref<14x128xf32, #tpu.memory_space<vmem>>, vector<10x128xf32>
    %60 = vector.broadcast %56 : vector<10x1xf32> to vector<10x128xf32>
    %61 = arith.mulf %59, %60 : vector<10x128xf32>
    %62 = vector.broadcast %57 : vector<10x1xf32> to vector<10x128xf32>
    %63 = arith.addf %61, %62 : vector<10x128xf32>
    %cst_44 = arith.constant 0.000000e+00 : f32
    %64 = vector.broadcast %cst_44 : f32 to vector<10x128xf32>
    %65 = arith.maximumf %63, %64 : vector<10x128xf32>
    %c9_i32_45 = arith.constant 9 : i32
    %66 = tpu.dynamic_rotate %65 by %c9_i32_45 dim 1 : vector<10x128xf32>, i32 -> vector<10x128xf32>
    %c0_46 = arith.constant 0 : index
    %c0_47 = arith.constant 0 : index
    %67 = vector.load %arg1[%c0_46, %c0_47] : memref<9x128xf32, #tpu.memory_space<vmem>>, vector<1x128xf32>
    %68 = vector.broadcast %67 : vector<1x128xf32> to vector<10x128xf32>
    %69 = arith.mulf %66, %68 : vector<10x128xf32>
    %c0_48 = arith.constant 0 : index
    %c0_49 = arith.constant 0 : index
    %70 = vector.load %arg14[%c0_48, %c0_49] : memref<90x128xf32, #tpu.memory_space<vmem>>, vector<10x128xf32>
    tpu.vector_store %arg14[%c0_48, %c0_49], %69 {strides = array<i32>} : memref<90x128xf32, #tpu.memory_space<vmem>>, vector<10x128xf32>,
    %c8_i32_50 = arith.constant 8 : i32
    %71 = tpu.dynamic_rotate %65 by %c8_i32_50 dim 1 : vector<10x128xf32>, i32 -> vector<10x128xf32>
    %c1_51 = arith.constant 1 : index
    %c0_52 = arith.constant 0 : index
    %72 = vector.load %arg1[%c1_51, %c0_52] : memref<9x128xf32, #tpu.memory_space<vmem>>, vector<1x128xf32>
    %73 = vector.broadcast %72 : vector<1x128xf32> to vector<10x128xf32>
    %74 = arith.mulf %71, %73 : vector<10x128xf32>
    %c10 = arith.constant 10 : index
    %c0_53 = arith.constant 0 : index
    %75 = vector.load %arg14[%c10, %c0_53] : memref<90x128xf32, #tpu.memory_space<vmem>>, vector<10x128xf32>
    tpu.vector_store %arg14[%c10, %c0_53], %74 {strides = array<i32>} : memref<90x128xf32, #tpu.memory_space<vmem>>, vector<10x128xf32>,
    %c7_i32_54 = arith.constant 7 : i32
    %76 = tpu.dynamic_rotate %65 by %c7_i32_54 dim 1 : vector<10x128xf32>, i32 -> vector<10x128xf32>
    %c2_55 = arith.constant 2 : index
    %c0_56 = arith.constant 0 : index
    %77 = vector.load %arg1[%c2_55, %c0_56] : memref<9x128xf32, #tpu.memory_space<vmem>>, vector<1x128xf32>
    %78 = vector.broadcast %77 : vector<1x128xf32> to vector<10x128xf32>
    %79 = arith.mulf %76, %78 : vector<10x128xf32>
    %c20 = arith.constant 20 : index
    %c0_57 = arith.constant 0 : index
    %80 = vector.load %arg14[%c20, %c0_57] : memref<90x128xf32, #tpu.memory_space<vmem>>, vector<10x128xf32>
    tpu.vector_store %arg14[%c20, %c0_57], %79 {strides = array<i32>} : memref<90x128xf32, #tpu.memory_space<vmem>>, vector<10x128xf32>,
    %c1_i32_58 = arith.constant 1 : i32
    %81 = tpu.dynamic_rotate %65 by %c1_i32_58 dim 1 : vector<10x128xf32>, i32 -> vector<10x128xf32>
    %c3_59 = arith.constant 3 : index
    %c0_60 = arith.constant 0 : index
    %82 = vector.load %arg1[%c3_59, %c0_60] : memref<9x128xf32, #tpu.memory_space<vmem>>, vector<1x128xf32>
    %83 = vector.broadcast %82 : vector<1x128xf32> to vector<10x128xf32>
    %84 = arith.mulf %81, %83 : vector<10x128xf32>
    %c30_61 = arith.constant 30 : index
    %c0_62 = arith.constant 0 : index
    %85 = vector.load %arg14[%c30_61, %c0_62] : memref<90x128xf32, #tpu.memory_space<vmem>>, vector<10x128xf32>
    tpu.vector_store %arg14[%c30_61, %c0_62], %84 {strides = array<i32>} : memref<90x128xf32, #tpu.memory_space<vmem>>, vector<10x128xf32>,
    %c40 = arith.constant 40 : index
    %c0_63 = arith.constant 0 : index
    %86 = vector.load %arg14[%c40, %c0_63] : memref<90x128xf32, #tpu.memory_space<vmem>>, vector<10x128xf32>
    tpu.vector_store %arg14[%c40, %c0_63], %65 {strides = array<i32>} : memref<90x128xf32, #tpu.memory_space<vmem>>, vector<10x128xf32>,
    %c127_i32_64 = arith.constant 127 : i32
    %87 = tpu.dynamic_rotate %65 by %c127_i32_64 dim 1 : vector<10x128xf32>, i32 -> vector<10x128xf32>
    %c5_65 = arith.constant 5 : index
    %c0_66 = arith.constant 0 : index
    %88 = vector.load %arg1[%c5_65, %c0_66] : memref<9x128xf32, #tpu.memory_space<vmem>>, vector<1x128xf32>
    %89 = vector.broadcast %88 : vector<1x128xf32> to vector<10x128xf32>
    %90 = arith.mulf %87, %89 : vector<10x128xf32>
    %c50 = arith.constant 50 : index
    %c0_67 = arith.constant 0 : index
    %91 = vector.load %arg14[%c50, %c0_67] : memref<90x128xf32, #tpu.memory_space<vmem>>, vector<10x128xf32>
    tpu.vector_store %arg14[%c50, %c0_67], %90 {strides = array<i32>} : memref<90x128xf32, #tpu.memory_space<vmem>>, vector<10x128xf32>,
    %c121_i32_68 = arith.constant 121 : i32
    %92 = tpu.dynamic_rotate %65 by %c121_i32_68 dim 1 : vector<10x128xf32>, i32 -> vector<10x128xf32>
    %c6_69 = arith.constant 6 : index
    %c0_70 = arith.constant 0 : index
    %93 = vector.load %arg1[%c6_69, %c0_70] : memref<9x128xf32, #tpu.memory_space<vmem>>, vector<1x128xf32>
    %94 = vector.broadcast %93 : vector<1x128xf32> to vector<10x128xf32>
    %95 = arith.mulf %92, %94 : vector<10x128xf32>
    %c60 = arith.constant 60 : index
    %c0_71 = arith.constant 0 : index
    %96 = vector.load %arg14[%c60, %c0_71] : memref<90x128xf32, #tpu.memory_space<vmem>>, vector<10x128xf32>
    tpu.vector_store %arg14[%c60, %c0_71], %95 {strides = array<i32>} : memref<90x128xf32, #tpu.memory_space<vmem>>, vector<10x128xf32>,
    %c120_i32_72 = arith.constant 120 : i32
    %97 = tpu.dynamic_rotate %65 by %c120_i32_72 dim 1 : vector<10x128xf32>, i32 -> vector<10x128xf32>
    %c7_73 = arith.constant 7 : index
    %c0_74 = arith.constant 0 : index
    %98 = vector.load %arg1[%c7_73, %c0_74] : memref<9x128xf32, #tpu.memory_space<vmem>>, vector<1x128xf32>
    %99 = vector.broadcast %98 : vector<1x128xf32> to vector<10x128xf32>
    %100 = arith.mulf %97, %99 : vector<10x128xf32>
    %c70 = arith.constant 70 : index
    %c0_75 = arith.constant 0 : index
    %101 = vector.load %arg14[%c70, %c0_75] : memref<90x128xf32, #tpu.memory_space<vmem>>, vector<10x128xf32>
    tpu.vector_store %arg14[%c70, %c0_75], %100 {strides = array<i32>} : memref<90x128xf32, #tpu.memory_space<vmem>>, vector<10x128xf32>,
    %c119_i32_76 = arith.constant 119 : i32
    %102 = tpu.dynamic_rotate %65 by %c119_i32_76 dim 1 : vector<10x128xf32>, i32 -> vector<10x128xf32>
    %c8_77 = arith.constant 8 : index
    %c0_78 = arith.constant 0 : index
    %103 = vector.load %arg1[%c8_77, %c0_78] : memref<9x128xf32, #tpu.memory_space<vmem>>, vector<1x128xf32>
    %104 = vector.broadcast %103 : vector<1x128xf32> to vector<10x128xf32>
    %105 = arith.mulf %102, %104 : vector<10x128xf32>
    %c80 = arith.constant 80 : index
    %c0_79 = arith.constant 0 : index
    %106 = vector.load %arg14[%c80, %c0_79] : memref<90x128xf32, #tpu.memory_space<vmem>>, vector<10x128xf32>
    tpu.vector_store %arg14[%c80, %c0_79], %105 {strides = array<i32>} : memref<90x128xf32, #tpu.memory_space<vmem>>, vector<10x128xf32>,
    %c0_80 = arith.constant 0 : index
    %c0_81 = arith.constant 0 : index
    %107 = vector.load %arg14[%c0_80, %c0_81] : memref<90x128xf32, #tpu.memory_space<vmem>>, vector<90x128xf32>
    %cst_82 = arith.constant dense<0.000000e+00> : vector<4x128xf32>
    %108 = tpu.matmul %58, %107, %cst_82 {dimension_numbers = #tpu.dot_dimension_numbers<[1], [0], [0], [1], [0, 0, 1, 1], [], []>} : vector<4x90xf32>, vector<90x128xf32>, vector<4x128xf32> -> vector<4x128xf32>
    %c10_83 = arith.constant 10 : index
    %c0_84 = arith.constant 0 : index
    %109 = vector.load %arg13[%c10_83, %c0_84] : memref<14x128xf32, #tpu.memory_space<vmem>>, vector<4x128xf32>
    tpu.vector_store %arg13[%c10_83, %c0_84], %108 {strides = array<i32>} : memref<14x128xf32, #tpu.memory_space<vmem>>, vector<4x128xf32>,
    %c0_85 = arith.constant 0 : index
    %c0_86 = arith.constant 0 : index
    %110 = vector.load %arg8[%c0_85, %c0_86] : memref<14x1xf32, #tpu.memory_space<vmem>>, vector<14x1xf32>
    %c0_87 = arith.constant 0 : index
    %c0_88 = arith.constant 0 : index
    %111 = vector.load %arg9[%c0_87, %c0_88] : memref<14x1xf32, #tpu.memory_space<vmem>>, vector<14x1xf32>
    %c0_89 = arith.constant 0 : index
    %c0_90 = arith.constant 0 : index
    %112 = vector.load %arg10[%c0_89, %c0_90] : memref<7x14xf32, #tpu.memory_space<vmem>>, vector<7x14xf32>
    %c0_91 = arith.constant 0 : index
    %c0_92 = arith.constant 0 : index
    %113 = vector.load %arg11[%c0_91, %c0_92] : memref<128x32xf32, #tpu.memory_space<vmem>>, vector<128x32xf32>
    %c0_93 = arith.constant 0 : index
    %c0_94 = arith.constant 0 : index
    %114 = vector.load %arg13[%c0_93, %c0_94] : memref<14x128xf32, #tpu.memory_space<vmem>>, vector<14x128xf32>
    %115 = vector.broadcast %110 : vector<14x1xf32> to vector<14x128xf32>
    %116 = arith.mulf %114, %115 : vector<14x128xf32>
    %117 = vector.broadcast %111 : vector<14x1xf32> to vector<14x128xf32>
    %118 = arith.addf %116, %117 : vector<14x128xf32>
    %cst_95 = arith.constant 0.000000e+00 : f32
    %119 = vector.broadcast %cst_95 : f32 to vector<14x128xf32>
    %120 = arith.maximumf %118, %119 : vector<14x128xf32>
    %cst_96 = arith.constant dense<0.000000e+00> : vector<7x128xf32>
    %121 = tpu.matmul %112, %120, %cst_96 {dimension_numbers = #tpu.dot_dimension_numbers<[1], [0], [0], [1], [0, 0, 1, 1], [], []>} : vector<7x14xf32>, vector<14x128xf32>, vector<7x128xf32> -> vector<7x128xf32>
    %cst_97 = arith.constant dense<0.000000e+00> : vector<7x32xf32>
    %122 = tpu.matmul %121, %113, %cst_97 {dimension_numbers = #tpu.dot_dimension_numbers<[1], [0], [0], [1], [0, 0, 1, 1], [], []>} : vector<7x128xf32>, vector<128x32xf32>, vector<7x32xf32> -> vector<7x32xf32>
    %c0_98 = arith.constant 0 : index
    %c0_99 = arith.constant 0 : index
    %123 = vector.load %arg12[%c0_98, %c0_99] : memref<7x32xf32, #tpu.memory_space<vmem>>, vector<7x32xf32>
    tpu.vector_store %arg12[%c0_98, %c0_99], %122 {strides = array<i32>} : memref<7x32xf32, #tpu.memory_space<vmem>>, vector<7x32xf32>,
    return
  }
}

module attributes {stable_mosaic.version = 11 : i64} {
  func.func @kernel(%arg0: memref<4x512xf32, #tpu.memory_space<vmem>>, %arg1: memref<9x512xf32, #tpu.memory_space<vmem>>, %arg2: memref<4x1xf32, #tpu.memory_space<vmem>>, %arg3: memref<4x1xf32, #tpu.memory_space<vmem>>, %arg4: memref<4x36xf32, #tpu.memory_space<vmem>>, %arg5: memref<8x1xf32, #tpu.memory_space<vmem>>, %arg6: memref<8x1xf32, #tpu.memory_space<vmem>>, %arg7: memref<4x72xf32, #tpu.memory_space<vmem>>, %arg8: memref<12x1xf32, #tpu.memory_space<vmem>>, %arg9: memref<12x1xf32, #tpu.memory_space<vmem>>, %arg10: memref<6x12xf32, #tpu.memory_space<vmem>>, %arg11: memref<512x128xf32, #tpu.memory_space<vmem>>, %arg12: memref<6x128xf32, #tpu.memory_space<vmem>>, %arg13: memref<12x512xf32, #tpu.memory_space<vmem>>, %arg14: memref<72x512xf32, #tpu.memory_space<vmem>>) attributes {dimension_semantics = [], scalar_prefetch = 0 : i64, scratch_operands = 2 : i64, tpu.core_type = #tpu.core_type<tc>} {
    %c0 = arith.constant 0 : index
    %c0_0 = arith.constant 0 : index
    %0 = vector.load %arg0[%c0, %c0_0] : memref<4x512xf32, #tpu.memory_space<vmem>>, vector<4x512xf32>
    %c0_1 = arith.constant 0 : index
    %c0_2 = arith.constant 0 : index
    %1 = vector.load %arg13[%c0_1, %c0_2] : memref<12x512xf32, #tpu.memory_space<vmem>>, vector<4x512xf32>
    tpu.vector_store %arg13[%c0_1, %c0_2], %0 {strides = array<i32>} : memref<12x512xf32, #tpu.memory_space<vmem>>, vector<4x512xf32>,
    %c0_3 = arith.constant 0 : index
    %c0_4 = arith.constant 0 : index
    %2 = vector.load %arg2[%c0_3, %c0_4] : memref<4x1xf32, #tpu.memory_space<vmem>>, vector<4x1xf32>
    %c0_5 = arith.constant 0 : index
    %c0_6 = arith.constant 0 : index
    %3 = vector.load %arg3[%c0_5, %c0_6] : memref<4x1xf32, #tpu.memory_space<vmem>>, vector<4x1xf32>
    %c0_7 = arith.constant 0 : index
    %c0_8 = arith.constant 0 : index
    %4 = vector.load %arg4[%c0_7, %c0_8] : memref<4x36xf32, #tpu.memory_space<vmem>>, vector<4x36xf32>
    %c0_9 = arith.constant 0 : index
    %c0_10 = arith.constant 0 : index
    %5 = vector.load %arg13[%c0_9, %c0_10] : memref<12x512xf32, #tpu.memory_space<vmem>>, vector<4x512xf32>
    %6 = vector.broadcast %2 : vector<4x1xf32> to vector<4x512xf32>
    %7 = arith.mulf %5, %6 : vector<4x512xf32>
    %8 = vector.broadcast %3 : vector<4x1xf32> to vector<4x512xf32>
    %9 = arith.addf %7, %8 : vector<4x512xf32>
    %cst = arith.constant 0.000000e+00 : f32
    %10 = vector.broadcast %cst : f32 to vector<4x512xf32>
    %11 = arith.maximumf %9, %10 : vector<4x512xf32>
    %c17_i32 = arith.constant 17 : i32
    %12 = tpu.dynamic_rotate %11 by %c17_i32 dim 1 : vector<4x512xf32>, i32 -> vector<4x512xf32>
    %c0_11 = arith.constant 0 : index
    %c0_12 = arith.constant 0 : index
    %13 = vector.load %arg1[%c0_11, %c0_12] : memref<9x512xf32, #tpu.memory_space<vmem>>, vector<1x512xf32>
    %14 = vector.broadcast %13 : vector<1x512xf32> to vector<4x512xf32>
    %15 = arith.mulf %12, %14 : vector<4x512xf32>
    %c0_13 = arith.constant 0 : index
    %c0_14 = arith.constant 0 : index
    %16 = vector.load %arg14[%c0_13, %c0_14] : memref<72x512xf32, #tpu.memory_space<vmem>>, vector<4x512xf32>
    tpu.vector_store %arg14[%c0_13, %c0_14], %15 {strides = array<i32>} : memref<72x512xf32, #tpu.memory_space<vmem>>, vector<4x512xf32>,
    %c16_i32 = arith.constant 16 : i32
    %17 = tpu.dynamic_rotate %11 by %c16_i32 dim 1 : vector<4x512xf32>, i32 -> vector<4x512xf32>
    %c1 = arith.constant 1 : index
    %c0_15 = arith.constant 0 : index
    %18 = vector.load %arg1[%c1, %c0_15] : memref<9x512xf32, #tpu.memory_space<vmem>>, vector<1x512xf32>
    %19 = vector.broadcast %18 : vector<1x512xf32> to vector<4x512xf32>
    %20 = arith.mulf %17, %19 : vector<4x512xf32>
    %c4 = arith.constant 4 : index
    %c0_16 = arith.constant 0 : index
    %21 = vector.load %arg14[%c4, %c0_16] : memref<72x512xf32, #tpu.memory_space<vmem>>, vector<4x512xf32>
    tpu.vector_store %arg14[%c4, %c0_16], %20 {strides = array<i32>} : memref<72x512xf32, #tpu.memory_space<vmem>>, vector<4x512xf32>,
    %c15_i32 = arith.constant 15 : i32
    %22 = tpu.dynamic_rotate %11 by %c15_i32 dim 1 : vector<4x512xf32>, i32 -> vector<4x512xf32>
    %c2 = arith.constant 2 : index
    %c0_17 = arith.constant 0 : index
    %23 = vector.load %arg1[%c2, %c0_17] : memref<9x512xf32, #tpu.memory_space<vmem>>, vector<1x512xf32>
    %24 = vector.broadcast %23 : vector<1x512xf32> to vector<4x512xf32>
    %25 = arith.mulf %22, %24 : vector<4x512xf32>
    %c8 = arith.constant 8 : index
    %c0_18 = arith.constant 0 : index
    %26 = vector.load %arg14[%c8, %c0_18] : memref<72x512xf32, #tpu.memory_space<vmem>>, vector<4x512xf32>
    tpu.vector_store %arg14[%c8, %c0_18], %25 {strides = array<i32>} : memref<72x512xf32, #tpu.memory_space<vmem>>, vector<4x512xf32>,
    %c1_i32 = arith.constant 1 : i32
    %27 = tpu.dynamic_rotate %11 by %c1_i32 dim 1 : vector<4x512xf32>, i32 -> vector<4x512xf32>
    %c3 = arith.constant 3 : index
    %c0_19 = arith.constant 0 : index
    %28 = vector.load %arg1[%c3, %c0_19] : memref<9x512xf32, #tpu.memory_space<vmem>>, vector<1x512xf32>
    %29 = vector.broadcast %28 : vector<1x512xf32> to vector<4x512xf32>
    %30 = arith.mulf %27, %29 : vector<4x512xf32>
    %c12 = arith.constant 12 : index
    %c0_20 = arith.constant 0 : index
    %31 = vector.load %arg14[%c12, %c0_20] : memref<72x512xf32, #tpu.memory_space<vmem>>, vector<4x512xf32>
    tpu.vector_store %arg14[%c12, %c0_20], %30 {strides = array<i32>} : memref<72x512xf32, #tpu.memory_space<vmem>>, vector<4x512xf32>,
    %c16 = arith.constant 16 : index
    %c0_21 = arith.constant 0 : index
    %32 = vector.load %arg14[%c16, %c0_21] : memref<72x512xf32, #tpu.memory_space<vmem>>, vector<4x512xf32>
    tpu.vector_store %arg14[%c16, %c0_21], %11 {strides = array<i32>} : memref<72x512xf32, #tpu.memory_space<vmem>>, vector<4x512xf32>,
    %c511_i32 = arith.constant 511 : i32
    %33 = tpu.dynamic_rotate %11 by %c511_i32 dim 1 : vector<4x512xf32>, i32 -> vector<4x512xf32>
    %c5 = arith.constant 5 : index
    %c0_22 = arith.constant 0 : index
    %34 = vector.load %arg1[%c5, %c0_22] : memref<9x512xf32, #tpu.memory_space<vmem>>, vector<1x512xf32>
    %35 = vector.broadcast %34 : vector<1x512xf32> to vector<4x512xf32>
    %36 = arith.mulf %33, %35 : vector<4x512xf32>
    %c20 = arith.constant 20 : index
    %c0_23 = arith.constant 0 : index
    %37 = vector.load %arg14[%c20, %c0_23] : memref<72x512xf32, #tpu.memory_space<vmem>>, vector<4x512xf32>
    tpu.vector_store %arg14[%c20, %c0_23], %36 {strides = array<i32>} : memref<72x512xf32, #tpu.memory_space<vmem>>, vector<4x512xf32>,
    %c497_i32 = arith.constant 497 : i32
    %38 = tpu.dynamic_rotate %11 by %c497_i32 dim 1 : vector<4x512xf32>, i32 -> vector<4x512xf32>
    %c6 = arith.constant 6 : index
    %c0_24 = arith.constant 0 : index
    %39 = vector.load %arg1[%c6, %c0_24] : memref<9x512xf32, #tpu.memory_space<vmem>>, vector<1x512xf32>
    %40 = vector.broadcast %39 : vector<1x512xf32> to vector<4x512xf32>
    %41 = arith.mulf %38, %40 : vector<4x512xf32>
    %c24 = arith.constant 24 : index
    %c0_25 = arith.constant 0 : index
    %42 = vector.load %arg14[%c24, %c0_25] : memref<72x512xf32, #tpu.memory_space<vmem>>, vector<4x512xf32>
    tpu.vector_store %arg14[%c24, %c0_25], %41 {strides = array<i32>} : memref<72x512xf32, #tpu.memory_space<vmem>>, vector<4x512xf32>,
    %c496_i32 = arith.constant 496 : i32
    %43 = tpu.dynamic_rotate %11 by %c496_i32 dim 1 : vector<4x512xf32>, i32 -> vector<4x512xf32>
    %c7 = arith.constant 7 : index
    %c0_26 = arith.constant 0 : index
    %44 = vector.load %arg1[%c7, %c0_26] : memref<9x512xf32, #tpu.memory_space<vmem>>, vector<1x512xf32>
    %45 = vector.broadcast %44 : vector<1x512xf32> to vector<4x512xf32>
    %46 = arith.mulf %43, %45 : vector<4x512xf32>
    %c28 = arith.constant 28 : index
    %c0_27 = arith.constant 0 : index
    %47 = vector.load %arg14[%c28, %c0_27] : memref<72x512xf32, #tpu.memory_space<vmem>>, vector<4x512xf32>
    tpu.vector_store %arg14[%c28, %c0_27], %46 {strides = array<i32>} : memref<72x512xf32, #tpu.memory_space<vmem>>, vector<4x512xf32>,
    %c495_i32 = arith.constant 495 : i32
    %48 = tpu.dynamic_rotate %11 by %c495_i32 dim 1 : vector<4x512xf32>, i32 -> vector<4x512xf32>
    %c8_28 = arith.constant 8 : index
    %c0_29 = arith.constant 0 : index
    %49 = vector.load %arg1[%c8_28, %c0_29] : memref<9x512xf32, #tpu.memory_space<vmem>>, vector<1x512xf32>
    %50 = vector.broadcast %49 : vector<1x512xf32> to vector<4x512xf32>
    %51 = arith.mulf %48, %50 : vector<4x512xf32>
    %c32 = arith.constant 32 : index
    %c0_30 = arith.constant 0 : index
    %52 = vector.load %arg14[%c32, %c0_30] : memref<72x512xf32, #tpu.memory_space<vmem>>, vector<4x512xf32>
    tpu.vector_store %arg14[%c32, %c0_30], %51 {strides = array<i32>} : memref<72x512xf32, #tpu.memory_space<vmem>>, vector<4x512xf32>,
    %c0_31 = arith.constant 0 : index
    %c0_32 = arith.constant 0 : index
    %53 = vector.load %arg14[%c0_31, %c0_32] : memref<72x512xf32, #tpu.memory_space<vmem>>, vector<36x512xf32>
    %cst_33 = arith.constant dense<0.000000e+00> : vector<4x512xf32>
    %54 = tpu.matmul %4, %53, %cst_33 {dimension_numbers = #tpu.dot_dimension_numbers<[1], [0], [0], [1], [0, 0, 1, 1], [], []>} : vector<4x36xf32>, vector<36x512xf32>, vector<4x512xf32> -> vector<4x512xf32>
    %c4_34 = arith.constant 4 : index
    %c0_35 = arith.constant 0 : index
    %55 = vector.load %arg13[%c4_34, %c0_35] : memref<12x512xf32, #tpu.memory_space<vmem>>, vector<4x512xf32>
    tpu.vector_store %arg13[%c4_34, %c0_35], %54 {strides = array<i32>} : memref<12x512xf32, #tpu.memory_space<vmem>>, vector<4x512xf32>,
    %c0_36 = arith.constant 0 : index
    %c0_37 = arith.constant 0 : index
    %56 = vector.load %arg5[%c0_36, %c0_37] : memref<8x1xf32, #tpu.memory_space<vmem>>, vector<8x1xf32>
    %c0_38 = arith.constant 0 : index
    %c0_39 = arith.constant 0 : index
    %57 = vector.load %arg6[%c0_38, %c0_39] : memref<8x1xf32, #tpu.memory_space<vmem>>, vector<8x1xf32>
    %c0_40 = arith.constant 0 : index
    %c0_41 = arith.constant 0 : index
    %58 = vector.load %arg7[%c0_40, %c0_41] : memref<4x72xf32, #tpu.memory_space<vmem>>, vector<4x72xf32>
    %c0_42 = arith.constant 0 : index
    %c0_43 = arith.constant 0 : index
    %59 = vector.load %arg13[%c0_42, %c0_43] : memref<12x512xf32, #tpu.memory_space<vmem>>, vector<8x512xf32>
    %60 = vector.broadcast %56 : vector<8x1xf32> to vector<8x512xf32>
    %61 = arith.mulf %59, %60 : vector<8x512xf32>
    %62 = vector.broadcast %57 : vector<8x1xf32> to vector<8x512xf32>
    %63 = arith.addf %61, %62 : vector<8x512xf32>
    %cst_44 = arith.constant 0.000000e+00 : f32
    %64 = vector.broadcast %cst_44 : f32 to vector<8x512xf32>
    %65 = arith.maximumf %63, %64 : vector<8x512xf32>
    %c17_i32_45 = arith.constant 17 : i32
    %66 = tpu.dynamic_rotate %65 by %c17_i32_45 dim 1 : vector<8x512xf32>, i32 -> vector<8x512xf32>
    %c0_46 = arith.constant 0 : index
    %c0_47 = arith.constant 0 : index
    %67 = vector.load %arg1[%c0_46, %c0_47] : memref<9x512xf32, #tpu.memory_space<vmem>>, vector<1x512xf32>
    %68 = vector.broadcast %67 : vector<1x512xf32> to vector<8x512xf32>
    %69 = arith.mulf %66, %68 : vector<8x512xf32>
    %c0_48 = arith.constant 0 : index
    %c0_49 = arith.constant 0 : index
    %70 = vector.load %arg14[%c0_48, %c0_49] : memref<72x512xf32, #tpu.memory_space<vmem>>, vector<8x512xf32>
    tpu.vector_store %arg14[%c0_48, %c0_49], %69 {strides = array<i32>} : memref<72x512xf32, #tpu.memory_space<vmem>>, vector<8x512xf32>,
    %c16_i32_50 = arith.constant 16 : i32
    %71 = tpu.dynamic_rotate %65 by %c16_i32_50 dim 1 : vector<8x512xf32>, i32 -> vector<8x512xf32>
    %c1_51 = arith.constant 1 : index
    %c0_52 = arith.constant 0 : index
    %72 = vector.load %arg1[%c1_51, %c0_52] : memref<9x512xf32, #tpu.memory_space<vmem>>, vector<1x512xf32>
    %73 = vector.broadcast %72 : vector<1x512xf32> to vector<8x512xf32>
    %74 = arith.mulf %71, %73 : vector<8x512xf32>
    %c8_53 = arith.constant 8 : index
    %c0_54 = arith.constant 0 : index
    %75 = vector.load %arg14[%c8_53, %c0_54] : memref<72x512xf32, #tpu.memory_space<vmem>>, vector<8x512xf32>
    tpu.vector_store %arg14[%c8_53, %c0_54], %74 {strides = array<i32>} : memref<72x512xf32, #tpu.memory_space<vmem>>, vector<8x512xf32>,
    %c15_i32_55 = arith.constant 15 : i32
    %76 = tpu.dynamic_rotate %65 by %c15_i32_55 dim 1 : vector<8x512xf32>, i32 -> vector<8x512xf32>
    %c2_56 = arith.constant 2 : index
    %c0_57 = arith.constant 0 : index
    %77 = vector.load %arg1[%c2_56, %c0_57] : memref<9x512xf32, #tpu.memory_space<vmem>>, vector<1x512xf32>
    %78 = vector.broadcast %77 : vector<1x512xf32> to vector<8x512xf32>
    %79 = arith.mulf %76, %78 : vector<8x512xf32>
    %c16_58 = arith.constant 16 : index
    %c0_59 = arith.constant 0 : index
    %80 = vector.load %arg14[%c16_58, %c0_59] : memref<72x512xf32, #tpu.memory_space<vmem>>, vector<8x512xf32>
    tpu.vector_store %arg14[%c16_58, %c0_59], %79 {strides = array<i32>} : memref<72x512xf32, #tpu.memory_space<vmem>>, vector<8x512xf32>,
    %c1_i32_60 = arith.constant 1 : i32
    %81 = tpu.dynamic_rotate %65 by %c1_i32_60 dim 1 : vector<8x512xf32>, i32 -> vector<8x512xf32>
    %c3_61 = arith.constant 3 : index
    %c0_62 = arith.constant 0 : index
    %82 = vector.load %arg1[%c3_61, %c0_62] : memref<9x512xf32, #tpu.memory_space<vmem>>, vector<1x512xf32>
    %83 = vector.broadcast %82 : vector<1x512xf32> to vector<8x512xf32>
    %84 = arith.mulf %81, %83 : vector<8x512xf32>
    %c24_63 = arith.constant 24 : index
    %c0_64 = arith.constant 0 : index
    %85 = vector.load %arg14[%c24_63, %c0_64] : memref<72x512xf32, #tpu.memory_space<vmem>>, vector<8x512xf32>
    tpu.vector_store %arg14[%c24_63, %c0_64], %84 {strides = array<i32>} : memref<72x512xf32, #tpu.memory_space<vmem>>, vector<8x512xf32>,
    %c32_65 = arith.constant 32 : index
    %c0_66 = arith.constant 0 : index
    %86 = vector.load %arg14[%c32_65, %c0_66] : memref<72x512xf32, #tpu.memory_space<vmem>>, vector<8x512xf32>
    tpu.vector_store %arg14[%c32_65, %c0_66], %65 {strides = array<i32>} : memref<72x512xf32, #tpu.memory_space<vmem>>, vector<8x512xf32>,
    %c511_i32_67 = arith.constant 511 : i32
    %87 = tpu.dynamic_rotate %65 by %c511_i32_67 dim 1 : vector<8x512xf32>, i32 -> vector<8x512xf32>
    %c5_68 = arith.constant 5 : index
    %c0_69 = arith.constant 0 : index
    %88 = vector.load %arg1[%c5_68, %c0_69] : memref<9x512xf32, #tpu.memory_space<vmem>>, vector<1x512xf32>
    %89 = vector.broadcast %88 : vector<1x512xf32> to vector<8x512xf32>
    %90 = arith.mulf %87, %89 : vector<8x512xf32>
    %c40 = arith.constant 40 : index
    %c0_70 = arith.constant 0 : index
    %91 = vector.load %arg14[%c40, %c0_70] : memref<72x512xf32, #tpu.memory_space<vmem>>, vector<8x512xf32>
    tpu.vector_store %arg14[%c40, %c0_70], %90 {strides = array<i32>} : memref<72x512xf32, #tpu.memory_space<vmem>>, vector<8x512xf32>,
    %c497_i32_71 = arith.constant 497 : i32
    %92 = tpu.dynamic_rotate %65 by %c497_i32_71 dim 1 : vector<8x512xf32>, i32 -> vector<8x512xf32>
    %c6_72 = arith.constant 6 : index
    %c0_73 = arith.constant 0 : index
    %93 = vector.load %arg1[%c6_72, %c0_73] : memref<9x512xf32, #tpu.memory_space<vmem>>, vector<1x512xf32>
    %94 = vector.broadcast %93 : vector<1x512xf32> to vector<8x512xf32>
    %95 = arith.mulf %92, %94 : vector<8x512xf32>
    %c48 = arith.constant 48 : index
    %c0_74 = arith.constant 0 : index
    %96 = vector.load %arg14[%c48, %c0_74] : memref<72x512xf32, #tpu.memory_space<vmem>>, vector<8x512xf32>
    tpu.vector_store %arg14[%c48, %c0_74], %95 {strides = array<i32>} : memref<72x512xf32, #tpu.memory_space<vmem>>, vector<8x512xf32>,
    %c496_i32_75 = arith.constant 496 : i32
    %97 = tpu.dynamic_rotate %65 by %c496_i32_75 dim 1 : vector<8x512xf32>, i32 -> vector<8x512xf32>
    %c7_76 = arith.constant 7 : index
    %c0_77 = arith.constant 0 : index
    %98 = vector.load %arg1[%c7_76, %c0_77] : memref<9x512xf32, #tpu.memory_space<vmem>>, vector<1x512xf32>
    %99 = vector.broadcast %98 : vector<1x512xf32> to vector<8x512xf32>
    %100 = arith.mulf %97, %99 : vector<8x512xf32>
    %c56 = arith.constant 56 : index
    %c0_78 = arith.constant 0 : index
    %101 = vector.load %arg14[%c56, %c0_78] : memref<72x512xf32, #tpu.memory_space<vmem>>, vector<8x512xf32>
    tpu.vector_store %arg14[%c56, %c0_78], %100 {strides = array<i32>} : memref<72x512xf32, #tpu.memory_space<vmem>>, vector<8x512xf32>,
    %c495_i32_79 = arith.constant 495 : i32
    %102 = tpu.dynamic_rotate %65 by %c495_i32_79 dim 1 : vector<8x512xf32>, i32 -> vector<8x512xf32>
    %c8_80 = arith.constant 8 : index
    %c0_81 = arith.constant 0 : index
    %103 = vector.load %arg1[%c8_80, %c0_81] : memref<9x512xf32, #tpu.memory_space<vmem>>, vector<1x512xf32>
    %104 = vector.broadcast %103 : vector<1x512xf32> to vector<8x512xf32>
    %105 = arith.mulf %102, %104 : vector<8x512xf32>
    %c64 = arith.constant 64 : index
    %c0_82 = arith.constant 0 : index
    %106 = vector.load %arg14[%c64, %c0_82] : memref<72x512xf32, #tpu.memory_space<vmem>>, vector<8x512xf32>
    tpu.vector_store %arg14[%c64, %c0_82], %105 {strides = array<i32>} : memref<72x512xf32, #tpu.memory_space<vmem>>, vector<8x512xf32>,
    %c0_83 = arith.constant 0 : index
    %c0_84 = arith.constant 0 : index
    %107 = vector.load %arg14[%c0_83, %c0_84] : memref<72x512xf32, #tpu.memory_space<vmem>>, vector<72x512xf32>
    %cst_85 = arith.constant dense<0.000000e+00> : vector<4x512xf32>
    %108 = tpu.matmul %58, %107, %cst_85 {dimension_numbers = #tpu.dot_dimension_numbers<[1], [0], [0], [1], [0, 0, 1, 1], [], []>} : vector<4x72xf32>, vector<72x512xf32>, vector<4x512xf32> -> vector<4x512xf32>
    %c8_86 = arith.constant 8 : index
    %c0_87 = arith.constant 0 : index
    %109 = vector.load %arg13[%c8_86, %c0_87] : memref<12x512xf32, #tpu.memory_space<vmem>>, vector<4x512xf32>
    tpu.vector_store %arg13[%c8_86, %c0_87], %108 {strides = array<i32>} : memref<12x512xf32, #tpu.memory_space<vmem>>, vector<4x512xf32>,
    %c0_88 = arith.constant 0 : index
    %c0_89 = arith.constant 0 : index
    %110 = vector.load %arg8[%c0_88, %c0_89] : memref<12x1xf32, #tpu.memory_space<vmem>>, vector<12x1xf32>
    %c0_90 = arith.constant 0 : index
    %c0_91 = arith.constant 0 : index
    %111 = vector.load %arg9[%c0_90, %c0_91] : memref<12x1xf32, #tpu.memory_space<vmem>>, vector<12x1xf32>
    %c0_92 = arith.constant 0 : index
    %c0_93 = arith.constant 0 : index
    %112 = vector.load %arg10[%c0_92, %c0_93] : memref<6x12xf32, #tpu.memory_space<vmem>>, vector<6x12xf32>
    %c0_94 = arith.constant 0 : index
    %c0_95 = arith.constant 0 : index
    %113 = vector.load %arg11[%c0_94, %c0_95] : memref<512x128xf32, #tpu.memory_space<vmem>>, vector<512x128xf32>
    %c0_96 = arith.constant 0 : index
    %c0_97 = arith.constant 0 : index
    %114 = vector.load %arg13[%c0_96, %c0_97] : memref<12x512xf32, #tpu.memory_space<vmem>>, vector<12x512xf32>
    %115 = vector.broadcast %110 : vector<12x1xf32> to vector<12x512xf32>
    %116 = arith.mulf %114, %115 : vector<12x512xf32>
    %117 = vector.broadcast %111 : vector<12x1xf32> to vector<12x512xf32>
    %118 = arith.addf %116, %117 : vector<12x512xf32>
    %cst_98 = arith.constant 0.000000e+00 : f32
    %119 = vector.broadcast %cst_98 : f32 to vector<12x512xf32>
    %120 = arith.maximumf %118, %119 : vector<12x512xf32>
    %cst_99 = arith.constant dense<0.000000e+00> : vector<6x512xf32>
    %121 = tpu.matmul %112, %120, %cst_99 {dimension_numbers = #tpu.dot_dimension_numbers<[1], [0], [0], [1], [0, 0, 1, 1], [], []>} : vector<6x12xf32>, vector<12x512xf32>, vector<6x512xf32> -> vector<6x512xf32>
    %cst_100 = arith.constant dense<0.000000e+00> : vector<6x128xf32>
    %122 = tpu.matmul %121, %113, %cst_100 {dimension_numbers = #tpu.dot_dimension_numbers<[1], [0], [0], [1], [0, 0, 1, 1], [], []>} : vector<6x512xf32>, vector<512x128xf32>, vector<6x128xf32> -> vector<6x128xf32>
    %c0_101 = arith.constant 0 : index
    %c0_102 = arith.constant 0 : index
    %123 = vector.load %arg12[%c0_101, %c0_102] : memref<6x128xf32, #tpu.memory_space<vmem>>, vector<6x128xf32>
    tpu.vector_store %arg12[%c0_101, %c0_102], %122 {strides = array<i32>} : memref<6x128xf32, #tpu.memory_space<vmem>>, vector<6x128xf32>,
    return
  }
}

</mosaic_0001>

<llo_original>
// kernel: make_blocks_forward.3
$region0: #{make_blocks_forward.3}
  #allocation0 [shape = 'u32[]', space=smem, size = 0x4, offset = 0x4, fixed_abs, tag = 'smem constant byte address 0x4 - core index']
  #allocation1 [shape = 'u32[144,128]{1,0:T(1,128)}', space=vmem, size = 0x12000, scoped, tag = 'internal scratch']
  #allocation2 [shape = 'f32[14,128]{1,0:T(8,128)}', space=vmem, size = 0x2000, scoped, tag = 'scratch operand']
  #allocation3 [shape = 'f32[90,128]{1,0:T(8,128)}', space=vmem, size = 0xc000, scoped, tag = 'scratch operand']
  %s0 = inlined_call_operand.vmem [shape: f32[6,128], index: 0, kind: input, shape index: {}]
  %s1 = inlined_call_operand.vmem [shape: f32[9,128], index: 1, kind: input, shape index: {}]
  %s2 = inlined_call_operand.vmem [shape: f32[6,1], index: 2, kind: input, shape index: {}]
  %s3 = inlined_call_operand.vmem [shape: f32[6,1], index: 3, kind: input, shape index: {}]
  %s4 = inlined_call_operand.vmem [shape: f32[4,54], index: 4, kind: input, shape index: {}]
  %s5 = inlined_call_operand.vmem [shape: f32[10,1], index: 5, kind: input, shape index: {}]
  %s6 = inlined_call_operand.vmem [shape: f32[10,1], index: 6, kind: input, shape index: {}]
  %s7 = inlined_call_operand.vmem [shape: f32[4,90], index: 7, kind: input, shape index: {}]
  %s8 = inlined_call_operand.vmem [shape: f32[14,1], index: 8, kind: input, shape index: {}]
  %s9 = inlined_call_operand.vmem [shape: f32[14,1], index: 9, kind: input, shape index: {}]
  %s10 = inlined_call_operand.vmem [shape: f32[7,14], index: 10, kind: input, shape index: {}]
  %s11 = inlined_call_operand.vmem [shape: f32[128,32], index: 11, kind: input, shape index: {}]
  %s12 = inlined_call_operand.vmem [shape: f32[7,32], index: 12, kind: output, shape index: {}]
  %s13 = sld [smem:[#allocation0]]
  $region58: #{make_blocks_forward.3} parent=0
    _
  %s15 = ssub.s32 1, %s13
  %s16 = scalar_select 0, %s15, %s13
  // Predicated region
  $region2: #{make_blocks_forward.3} parent=0 // pred_check
    _
  $region3: #{make_blocks_forward.3} parent=0 // pred_check_branch
    %18 = sbr.rel (0) target = $region5
  $region4: #{make_blocks_forward.3} parent=0 // pred_region
    _
  $region5: #{make_blocks_forward.3} parent=0 // pred_fallthru
    _
  // Predicated region
  $region6: #{make_blocks_forward.3} parent=0 // pred_check
    _
  $region7: #{make_blocks_forward.3} parent=0 // pred_check_branch
    %20 = sbr.rel (0) target = $region9
  $region8: #{make_blocks_forward.3} parent=0 // pred_region
    _
  $region9: #{make_blocks_forward.3} parent=0 // pred_fallthru
    _
  // Predicated region
  $region10: #{make_blocks_forward.3} parent=0 // pred_check
    _
  $region11: #{make_blocks_forward.3} parent=0 // pred_check_branch
    %22 = sbr.rel (0) target = $region13
  $region12: #{make_blocks_forward.3} parent=0 // pred_region
    _
  $region13: #{make_blocks_forward.3} parent=0 // pred_fallthru
    _
  // Predicated region
  $region14: #{make_blocks_forward.3} parent=0 // pred_check
    _
  $region15: #{make_blocks_forward.3} parent=0 // pred_check_branch
    %24 = sbr.rel (0) target = $region17
  $region16: #{make_blocks_forward.3} parent=0 // pred_region
    _
  $region17: #{make_blocks_forward.3} parent=0 // pred_fallthru
    _
  // Predicated region
  $region18: #{make_blocks_forward.3} parent=0 // pred_check
    _
  $region19: #{make_blocks_forward.3} parent=0 // pred_check_branch
    %26 = sbr.rel (0) target = $region21
  $region20: #{make_blocks_forward.3} parent=0 // pred_region
    _
  $region21: #{make_blocks_forward.3} parent=0 // pred_fallthru
    _
  // Predicated region
  $region22: #{make_blocks_forward.3} parent=0 // pred_check
    _
  $region23: #{make_blocks_forward.3} parent=0 // pred_check_branch
    %28 = sbr.rel (0) target = $region25
  $region24: #{make_blocks_forward.3} parent=0 // pred_region
    _
  $region25: #{make_blocks_forward.3} parent=0 // pred_fallthru
    _
  // Predicated region
  $region26: #{make_blocks_forward.3} parent=0 // pred_check
    _
  $region27: #{make_blocks_forward.3} parent=0 // pred_check_branch
    %30 = sbr.rel (0) target = $region29
  $region28: #{make_blocks_forward.3} parent=0 // pred_region
    _
  $region29: #{make_blocks_forward.3} parent=0 // pred_fallthru
    _
  // Predicated region
  $region30: #{make_blocks_forward.3} parent=0 // pred_check
    _
  $region31: #{make_blocks_forward.3} parent=0 // pred_check_branch
    %32 = sbr.rel (0) target = $region33
  $region32: #{make_blocks_forward.3} parent=0 // pred_region
    _
  $region33: #{make_blocks_forward.3} parent=0 // pred_fallthru
    _
  // Predicated region
  $region34: #{make_blocks_forward.3} parent=0 // pred_check
    _
  $region35: #{make_blocks_forward.3} parent=0 // pred_check_branch
    %34 = sbr.rel (0) target = $region37
  $region36: #{make_blocks_forward.3} parent=0 // pred_region
    _
  $region37: #{make_blocks_forward.3} parent=0 // pred_fallthru
    _
  // Predicated region
  $region38: #{make_blocks_forward.3} parent=0 // pred_check
    _
  $region39: #{make_blocks_forward.3} parent=0 // pred_check_branch
    %36 = sbr.rel (0) target = $region41
  $region40: #{make_blocks_forward.3} parent=0 // pred_region
    _
  $region41: #{make_blocks_forward.3} parent=0 // pred_fallthru
    _
  // Predicated region
  $region42: #{make_blocks_forward.3} parent=0 // pred_check
    _
  $region43: #{make_blocks_forward.3} parent=0 // pred_check_branch
    %38 = sbr.rel (0) target = $region45
  $region44: #{make_blocks_forward.3} parent=0 // pred_region
    _
  $region45: #{make_blocks_forward.3} parent=0 // pred_fallthru
    _
  // Predicated region
  $region46: #{make_blocks_forward.3} parent=0 // pred_check
    _
  $region47: #{make_blocks_forward.3} parent=0 // pred_check_branch
    %40 = sbr.rel (0) target = $region49
  $region48: #{make_blocks_forward.3} parent=0 // pred_region
    _
  $region49: #{make_blocks_forward.3} parent=0 // pred_fallthru
    _
  %v41 = vld [vmem:[%s0] sm:$0x3f]
  %42 = vst [vmem:[#allocation2] sm:$0x3f] %v41
  %v43 = vld [vmem:[%s2] sm:$0x3f]
  %v44 = vld [vmem:[%s3] sm:$0x3f]
  %v45 = vld [vmem:[%s4] sm:$0xf]
  %v46 = vld [vmem:[#allocation2] sm:$0x3f]
  %48 = vset.pattern.permute.xlu0 0
  %49 = vperm.xlu0 %48, %v43
  %v50 = vpop.permute.xlu0 %49
  %v52 = vmul.f32 %v46, %v50
  %54 = vset.pattern.permute.xlu0 0
  %55 = vperm.xlu0 %54, %v44
  %v56 = vpop.permute.xlu0 %55
  %v58 = vadd.f32 %v52, %v56
  %v59 = vmax.f32 %v58, 0.0
  %60 = vrot.lane.b32.xlu0 %v59, 9
  %v61 = vpop.permute.xlu0 %60
  %v62 = vld [vmem:[%s1] sm:$0x1]
  %v63 = vlaneseq
  %v64 = vshrl.u32 %v63, 7
  %v65 = vsub.s32 0, %v64
  %v66 = vrot.slane %v62, %v65
  %v67 = vmul.f32 %v61, %v66
  %68 = vst [vmem:[#allocation3] sm:$0x3f] %v67
  %69 = vrot.lane.b32.xlu0 %v59, 8
  %v70 = vpop.permute.xlu0 %69
  %v71 = vld [vmem:[%s1 + $0x1] sm:$0x1]
  %v72 = vlaneseq
  %v73 = vshrl.u32 %v72, 7
  %v74 = vsub.s32 0, %v73
  %v75 = vrot.slane %v71, %v74
  %v76 = vmul.f32 %v70, %v75
  %77 = vst [vmem:[#allocation3 + $0x6] sm:$0x3f] %v76
  %78 = vrot.lane.b32.xlu0 %v59, 7
  %v79 = vpop.permute.xlu0 %78
  %v80 = vld [vmem:[%s1 + $0x2] sm:$0x1]
  %v81 = vlaneseq
  %v82 = vshrl.u32 %v81, 7
  %v83 = vsub.s32 0, %v82
  %v84 = vrot.slane %v80, %v83
  %v85 = vmul.f32 %v79, %v84
  %86 = vst [vmem:[#allocation3 + $0xc] sm:$0x3f] %v85
  %87 = vrot.lane.b32.xlu0 %v59, 1
  %v88 = vpop.permute.xlu0 %87
  %v89 = vld [vmem:[%s1 + $0x3] sm:$0x1]
  %v90 = vlaneseq
  %v91 = vshrl.u32 %v90, 7
  %v92 = vsub.s32 0, %v91
  %v93 = vrot.slane %v89, %v92
  %v94 = vmul.f32 %v88, %v93
  %95 = vst [vmem:[#allocation3 + $0x12] sm:$0x3f] %v94
  %96 = vst [vmem:[#allocation3 + $0x18] sm:$0x3f] %v59
  %97 = vrot.lane.b32.xlu0 %v59, 127
  %v98 = vpop.permute.xlu0 %97
  %v99 = vld [vmem:[%s1 + $0x5] sm:$0x1]
  %v100 = vlaneseq
  %v101 = vshrl.u32 %v100, 7
  %v102 = vsub.s32 0, %v101
  %v103 = vrot.slane %v99, %v102
  %v104 = vmul.f32 %v98, %v103
  %105 = vst [vmem:[#allocation3 + $0x1e] sm:$0x3f] %v104
  %106 = vrot.lane.b32.xlu0 %v59, 121
  %v107 = vpop.permute.xlu0 %106
  %v108 = vld [vmem:[%s1 + $0x6] sm:$0x1]
  %v109 = vlaneseq
  %v110 = vshrl.u32 %v109, 7
  %v111 = vsub.s32 0, %v110
  %v112 = vrot.slane %v108, %v111
  %v113 = vmul.f32 %v107, %v112
  %114 = vst [vmem:[#allocation3 + $0x24] sm:$0x3f] %v113
  %115 = vrot.lane.b32.xlu0 %v59, 120
  %v116 = vpop.permute.xlu0 %115
  %v117 = vld [vmem:[%s1 + $0x7] sm:$0x1]
  %v118 = vlaneseq
  %v119 = vshrl.u32 %v118, 7
  %v120 = vsub.s32 0, %v119
  %v121 = vrot.slane %v117, %v120
  %v122 = vmul.f32 %v116, %v121
  %123 = vst [vmem:[#allocation3 + $0x2a] sm:$0x3f] %v122
  %124 = vrot.lane.b32.xlu0 %v59, 119
  %v125 = vpop.permute.xlu0 %124
  %v126 = vld [vmem:[%s1 + $0x8] sm:$0x1]
  %v127 = vlaneseq
  %v128 = vshrl.u32 %v127, 7
  %v129 = vsub.s32 0, %v128
  %v130 = vrot.slane %v126, %v129
  %v131 = vmul.f32 %v125, %v130
  %132 = vst [vmem:[#allocation3 + $0x30] sm:$0x3f] %v131
  %v133 = vld [vmem:[#allocation3] sm:$0xff]
  %v134 = vld [vmem:[#allocation3 + $0x8] sm:$0xff]
  %v135 = vld [vmem:[#allocation3 + $0x10] sm:$0xff]
  %v136 = vld [vmem:[#allocation3 + $0x18] sm:$0xff]
  %v137 = vld [vmem:[#allocation3 + $0x20] sm:$0xff]
  %v138 = vld [vmem:[#allocation3 + $0x28] sm:$0xff]
  %v139 = vld [vmem:[#allocation3 + $0x30] sm:$0x3f]
  %vm140 = vcmask 441344
  %v142 = vsel %vm140, %v45, 0
  %vm144 = vcmask 1045504
  %v146 = vsel %vm144, %v139, 0
  %148 = vmatprep.subr.mxu0 0.0
  %149 = vmatpush1.msra.mxu0 %v133
  %150 = vmatprep.subr.mxu0 0.0
  %151 = vmatpush1.msra.mxu0 %v134
  %152 = vmatprep.subr.mxu0 0.0
  %153 = vmatpush1.msra.mxu0 %v135
  %154 = vmatprep.subr.mxu0 0.0
  %155 = vmatpush1.msra.mxu0 %v136
  %156 = vmatprep.subr.mxu0 0.0
  %157 = vmatpush1.msra.mxu0 %v137
  %158 = vmatprep.subr.mxu0 0.0
  %159 = vmatpush1.msra.mxu0 %v138
  %160 = vmatprep.subr.mxu0 0.0
  %161 = vmatpush1.msra.mxu0 %v146
  %162 = vmatprep.subr.mxu0 0.0
  %163 = vmatpush1.msra.mxu0 0.0
  %164 = vmatprep.subr.mxu0 0.0
  %165 = vmatpush1.msra.mxu0 0.0
  %166 = vmatprep.subr.mxu0 0.0
  %167 = vmatpush1.msra.mxu0 0.0
  %168 = vmatprep.subr.mxu0 0.0
  %169 = vmatpush1.msra.mxu0 0.0
  %170 = vmatprep.subr.mxu0 0.0
  %171 = vmatpush1.msra.mxu0 0.0
  %172 = vmatprep.subr.mxu0 0.0
  %173 = vmatpush1.msra.mxu0 0.0
  %174 = vmatprep.subr.mxu0 0.0
  %175 = vmatpush1.msra.mxu0 0.0
  %176 = vmatprep.subr.mxu0 0.0
  %177 = vmatpush1.msra.mxu0 0.0
  %178 = vmatprep.subr.mxu0 0.0
  %179 = vmatpush1.msra.mxu0 0.0
  %180 = vmatprep.subr.mxu0 0.0
  %181 = vmatpush1.msra.mxu0 0.0
  %182 = vmatprep.subr.mxu0 0.0
  %183 = vmatpush1.msra.mxu0 0.0
  %184 = vmatprep.subr.mxu0 0.0
  %185 = vmatpush1.msra.mxu0 0.0
  %186 = vmatprep.subr.mxu0 0.0
  %187 = vmatpush1.msra.mxu0 0.0
  %188 = vmatprep.subr.mxu0 0.0
  %189 = vmatpush1.msra.mxu0 0.0
  %190 = vmatprep.subr.mxu0 0.0
  %191 = vmatpush1.msra.mxu0 0.0
  %192 = vmatprep.subr.mxu0 0.0
  %193 = vmatpush1.msra.mxu0 0.0
  %194 = vmatprep.subr.mxu0 0.0
  %195 = vmatpush1.msra.mxu0 0.0
  %196 = vmatprep.subr.mxu0 0.0
  %197 = vmatpush1.msra.mxu0 0.0
  %198 = vmatprep.subr.mxu0 0.0
  %199 = vmatpush1.msra.mxu0 0.0
  %200 = vmatprep.subr.mxu0 0.0
  %201 = vmatpush1.msra.mxu0 0.0
  %202 = vmatprep.subr.mxu0 0.0
  %203 = vmatpush1.msra.mxu0 0.0
  %204 = vmatprep.subr.mxu0 0.0
  %205 = vmatpush1.msra.mxu0 0.0
  %206 = vmatprep.subr.mxu0 0.0
  %207 = vmatpush1.msra.mxu0 0.0
  %208 = vmatprep.subr.mxu0 0.0
  %209 = vmatpush1.msra.mxu0 0.0
  %210 = vmatprep.subr.mxu0 0.0
  %211 = vmatpush1.msra.mxu0 0.0
  %212 = vmatprep.mubr.f32.mxu0 0.0
  %213 = vmatmul.mubr.f32.gmra.mrb[0].mxu0 %v142
  %v214 = vpop.f32.mrb[0].mxu0
  %v215 = vadd.f32 0.0, %v214
  %v216 = vpop.f32.mrb[0].mxu0
  %217 = vdwg.mxu0
  %218 = vst [vmem:[#allocation2 + $0x6] sm:$0xf] %v215
  %v219 = vld [vmem:[%s5] sm:$0xff]
  %v220 = vld [vmem:[%s5 + $0x8] sm:$0x3]
  %v221 = vld [vmem:[%s6] sm:$0xff]
  %v222 = vld [vmem:[%s6 + $0x8] sm:$0x3]
  %v223 = vld [vmem:[%s7] sm:$0xf]
  %v224 = vld [vmem:[#allocation2] sm:$0xff]
  %v225 = vld [vmem:[#allocation2 + $0x8] sm:$0x3]
  %227 = vset.pattern.permute.xlu0 0
  %228 = vperm.xlu0 %227, %v219
  %v229 = vpop.permute.xlu0 %228
  %232 = vset.pattern.permute.xlu0 0
  %233 = vperm.xlu0 %232, %v220
  %v234 = vpop.permute.xlu0 %233
  %v236 = vmul.f32 %v224, %v229
  %v237 = vmul.f32 %v225, %v234
  %239 = vset.pattern.permute.xlu0 0
  %240 = vperm.xlu0 %239, %v221
  %v241 = vpop.permute.xlu0 %240
  %244 = vset.pattern.permute.xlu0 0
  %245 = vperm.xlu0 %244, %v222
  %v246 = vpop.permute.xlu0 %245
  %v248 = vadd.f32 %v236, %v241
  %v249 = vadd.f32 %v237, %v246
  %v250 = vmax.f32 %v248, 0.0
  %v251 = vmax.f32 %v249, 0.0
  %252 = vrot.lane.b32.xlu0 %v250, 9
  %v253 = vpop.permute.xlu0 %252
  %254 = vrot.lane.b32.xlu0 %v251, 9
  %v255 = vpop.permute.xlu0 %254
  %v256 = vld [vmem:[%s1] sm:$0x1]
  %v257 = vlaneseq
  %v258 = vshrl.u32 %v257, 7
  %v259 = vsub.s32 0, %v258
  %v260 = vrot.slane %v256, %v259
  %v261 = vmul.f32 %v253, %v260
  %v262 = vmul.f32 %v255, %v260
  %263 = vst [vmem:[#allocation3] sm:$0xff] %v261
  %264 = vst [vmem:[#allocation3 + $0x8] sm:$0x3] %v262
  %265 = vrot.lane.b32.xlu0 %v250, 8
  %v266 = vpop.permute.xlu0 %265
  %267 = vrot.lane.b32.xlu0 %v251, 8
  %v268 = vpop.permute.xlu0 %267
  %v269 = vld [vmem:[%s1 + $0x1] sm:$0x1]
  %v270 = vlaneseq
  %v271 = vshrl.u32 %v270, 7
  %v272 = vsub.s32 0, %v271
  %v273 = vrot.slane %v269, %v272
  %v274 = vmul.f32 %v266, %v273
  %v275 = vmul.f32 %v268, %v273
  %276 = vst [vmem:[#allocation3 + $0xa] sm:$0xff] %v274
  %277 = vst [vmem:[#allocation3 + $0x12] sm:$0x3] %v275
  %278 = vrot.lane.b32.xlu0 %v250, 7
  %v279 = vpop.permute.xlu0 %278
  %280 = vrot.lane.b32.xlu0 %v251, 7
  %v281 = vpop.permute.xlu0 %280
  %v282 = vld [vmem:[%s1 + $0x2] sm:$0x1]
  %v283 = vlaneseq
  %v284 = vshrl.u32 %v283, 7
  %v285 = vsub.s32 0, %v284
  %v286 = vrot.slane %v282, %v285
  %v287 = vmul.f32 %v279, %v286
  %v288 = vmul.f32 %v281, %v286
  %289 = vst [vmem:[#allocation3 + $0x14] sm:$0xff] %v287
  %290 = vst [vmem:[#allocation3 + $0x1c] sm:$0x3] %v288
  %291 = vrot.lane.b32.xlu0 %v250, 1
  %v292 = vpop.permute.xlu0 %291
  %293 = vrot.lane.b32.xlu0 %v251, 1
  %v294 = vpop.permute.xlu0 %293
  %v295 = vld [vmem:[%s1 + $0x3] sm:$0x1]
  %v296 = vlaneseq
  %v297 = vshrl.u32 %v296, 7
  %v298 = vsub.s32 0, %v297
  %v299 = vrot.slane %v295, %v298
  %v300 = vmul.f32 %v292, %v299
  %v301 = vmul.f32 %v294, %v299
  %302 = vst [vmem:[#allocation3 + $0x1e] sm:$0xff] %v300
  %303 = vst [vmem:[#allocation3 + $0x26] sm:$0x3] %v301
  %304 = vst [vmem:[#allocation3 + $0x28] sm:$0xff] %v250
  %305 = vst [vmem:[#allocation3 + $0x30] sm:$0x3] %v251
  %306 = vrot.lane.b32.xlu0 %v250, 127
  %v307 = vpop.permute.xlu0 %306
  %308 = vrot.lane.b32.xlu0 %v251, 127
  %v309 = vpop.permute.xlu0 %308
  %v310 = vld [vmem:[%s1 + $0x5] sm:$0x1]
  %v311 = vlaneseq
  %v312 = vshrl.u32 %v311, 7
  %v313 = vsub.s32 0, %v312
  %v314 = vrot.slane %v310, %v313
  %v315 = vmul.f32 %v307, %v314
  %v316 = vmul.f32 %v309, %v314
  %317 = vst [vmem:[#allocation3 + $0x32] sm:$0xff] %v315
  %318 = vst [vmem:[#allocation3 + $0x3a] sm:$0x3] %v316
  %319 = vrot.lane.b32.xlu0 %v250, 121
  %v320 = vpop.permute.xlu0 %319
  %321 = vrot.lane.b32.xlu0 %v251, 121
  %v322 = vpop.permute.xlu0 %321
  %v323 = vld [vmem:[%s1 + $0x6] sm:$0x1]
  %v324 = vlaneseq
  %v325 = vshrl.u32 %v324, 7
  %v326 = vsub.s32 0, %v325
  %v327 = vrot.slane %v323, %v326
  %v328 = vmul.f32 %v320, %v327
  %v329 = vmul.f32 %v322, %v327
  %330 = vst [vmem:[#allocation3 + $0x3c] sm:$0xff] %v328
  %331 = vst [vmem:[#allocation3 + $0x44] sm:$0x3] %v329
  %332 = vrot.lane.b32.xlu0 %v250, 120
  %v333 = vpop.permute.xlu0 %332
  %334 = vrot.lane.b32.xlu0 %v251, 120
  %v335 = vpop.permute.xlu0 %334
  %v336 = vld [vmem:[%s1 + $0x7] sm:$0x1]
  %v337 = vlaneseq
  %v338 = vshrl.u32 %v337, 7
  %v339 = vsub.s32 0, %v338
  %v340 = vrot.slane %v336, %v339
  %v341 = vmul.f32 %v333, %v340
  %v342 = vmul.f32 %v335, %v340
  %343 = vst [vmem:[#allocation3 + $0x46] sm:$0xff] %v341
  %344 = vst [vmem:[#allocation3 + $0x4e] sm:$0x3] %v342
  %345 = vrot.lane.b32.xlu0 %v250, 119
  %v346 = vpop.permute.xlu0 %345
  %347 = vrot.lane.b32.xlu0 %v251, 119
  %v348 = vpop.permute.xlu0 %347
  %v349 = vld [vmem:[%s1 + $0x8] sm:$0x1]
  %v350 = vlaneseq
  %v351 = vshrl.u32 %v350, 7
  %v352 = vsub.s32 0, %v351
  %v353 = vrot.slane %v349, %v352
  %v354 = vmul.f32 %v346, %v353
  %v355 = vmul.f32 %v348, %v353
  %356 = vst [vmem:[#allocation3 + $0x50] sm:$0xff] %v354
  %357 = vst [vmem:[#allocation3 + $0x58] sm:$0x3] %v355
  %v358 = vld [vmem:[#allocation3] sm:$0xff]
  %v359 = vld [vmem:[#allocation3 + $0x8] sm:$0xff]
  %v360 = vld [vmem:[#allocation3 + $0x10] sm:$0xff]
  %v361 = vld [vmem:[#allocation3 + $0x18] sm:$0xff]
  %v362 = vld [vmem:[#allocation3 + $0x20] sm:$0xff]
  %v363 = vld [vmem:[#allocation3 + $0x28] sm:$0xff]
  %v364 = vld [vmem:[#allocation3 + $0x30] sm:$0xff]
  %v365 = vld [vmem:[#allocation3 + $0x38] sm:$0xff]
  %v366 = vld [vmem:[#allocation3 + $0x40] sm:$0xff]
  %v367 = vld [vmem:[#allocation3 + $0x48] sm:$0xff]
  %v368 = vld [vmem:[#allocation3 + $0x50] sm:$0xff]
  %v369 = vld [vmem:[#allocation3 + $0x58] sm:$0x3]
  %vm370 = vcmask 736256
  %v372 = vsel %vm370, %v223, 0
  %vm374 = vcmask 1041408
  %v376 = vsel %vm374, %v369, 0
  %378 = vmatprep.subr.mxu0 0.0
  %379 = vmatpush1.msra.mxu0 %v358
  %380 = vmatprep.subr.mxu0 0.0
  %381 = vmatpush1.msra.mxu0 %v359
  %382 = vmatprep.subr.mxu0 0.0
  %383 = vmatpush1.msra.mxu0 %v360
  %384 = vmatprep.subr.mxu0 0.0
  %385 = vmatpush1.msra.mxu0 %v361
  %386 = vmatprep.subr.mxu0 0.0
  %387 = vmatpush1.msra.mxu0 %v362
  %388 = vmatprep.subr.mxu0 0.0
  %389 = vmatpush1.msra.mxu0 %v363
  %390 = vmatprep.subr.mxu0 0.0
  %391 = vmatpush1.msra.mxu0 %v364
  %392 = vmatprep.subr.mxu0 0.0
  %393 = vmatpush1.msra.mxu0 %v365
  %394 = vmatprep.subr.mxu0 0.0
  %395 = vmatpush1.msra.mxu0 %v366
  %396 = vmatprep.subr.mxu0 0.0
  %397 = vmatpush1.msra.mxu0 %v367
  %398 = vmatprep.subr.mxu0 0.0
  %399 = vmatpush1.msra.mxu0 %v368
  %400 = vmatprep.subr.mxu0 0.0
  %401 = vmatpush1.msra.mxu0 %v376
  %402 = vmatprep.subr.mxu0 0.0
  %403 = vmatpush1.msra.mxu0 0.0
  %404 = vmatprep.subr.mxu0 0.0
  %405 = vmatpush1.msra.mxu0 0.0
  %406 = vmatprep.subr.mxu0 0.0
  %407 = vmatpush1.msra.mxu0 0.0
  %408 = vmatprep.subr.mxu0 0.0
  %409 = vmatpush1.msra.mxu0 0.0
  %410 = vmatprep.subr.mxu0 0.0
  %411 = vmatpush1.msra.mxu0 0.0
  %412 = vmatprep.subr.mxu0 0.0
  %413 = vmatpush1.msra.mxu0 0.0
  %414 = vmatprep.subr.mxu0 0.0
  %415 = vmatpush1.msra.mxu0 0.0
  %416 = vmatprep.subr.mxu0 0.0
  %417 = vmatpush1.msra.mxu0 0.0
  %418 = vmatprep.subr.mxu0 0.0
  %419 = vmatpush1.msra.mxu0 0.0
  %420 = vmatprep.subr.mxu0 0.0
  %421 = vmatpush1.msra.mxu0 0.0
  %422 = vmatprep.subr.mxu0 0.0
  %423 = vmatpush1.msra.mxu0 0.0
  %424 = vmatprep.subr.mxu0 0.0
  %425 = vmatpush1.msra.mxu0 0.0
  %426 = vmatprep.subr.mxu0 0.0
  %427 = vmatpush1.msra.mxu0 0.0
  %428 = vmatprep.subr.mxu0 0.0
  %429 = vmatpush1.msra.mxu0 0.0
  %430 = vmatprep.subr.mxu0 0.0
  %431 = vmatpush1.msra.mxu0 0.0
  %432 = vmatprep.subr.mxu0 0.0
  %433 = vmatpush1.msra.mxu0 0.0
  %434 = vmatprep.subr.mxu0 0.0
  %435 = vmatpush1.msra.mxu0 0.0
  %436 = vmatprep.subr.mxu0 0.0
  %437 = vmatpush1.msra.mxu0 0.0
  %438 = vmatprep.subr.mxu0 0.0
  %439 = vmatpush1.msra.mxu0 0.0
  %440 = vmatprep.subr.mxu0 0.0
  %441 = vmatpush1.msra.mxu0 0.0
  %442 = vmatprep.mubr.f32.mxu0 0.0
  %443 = vmatmul.mubr.f32.gmra.mrb[0].mxu0 %v372
  %v444 = vpop.f32.mrb[0].mxu0
  %v445 = vadd.f32 0.0, %v444
  %v446 = vpop.f32.mrb[0].mxu0
  %447 = vdwg.mxu0
  %448 = vst [vmem:[#allocation2 + $0xa] sm:$0xf] %v445
  %v449 = vld [vmem:[%s8] sm:$0xff]
  %v450 = vld [vmem:[%s8 + $0x8] sm:$0x3f]
  %v451 = vld [vmem:[%s9] sm:$0xff]
  %v452 = vld [vmem:[%s9 + $0x8] sm:$0x3f]
  %v453 = vld [vmem:[%s10] sm:$0x7f]
  %v454 = vld [vmem:[%s11] sm:$0xff]
  %v455 = vld [vmem:[%s11 + $0x8] sm:$0xff]
  %v456 = vld [vmem:[%s11 + $0x10] sm:$0xff]
  %v457 = vld [vmem:[%s11 + $0x18] sm:$0xff]
  %v458 = vld [vmem:[%s11 + $0x20] sm:$0xff]
  %v459 = vld [vmem:[%s11 + $0x28] sm:$0xff]
  %v460 = vld [vmem:[%s11 + $0x30] sm:$0xff]
  %v461 = vld [vmem:[%s11 + $0x38] sm:$0xff]
  %v462 = vld [vmem:[%s11 + $0x40] sm:$0xff]
  %v463 = vld [vmem:[%s11 + $0x48] sm:$0xff]
  %v464 = vld [vmem:[%s11 + $0x50] sm:$0xff]
  %v465 = vld [vmem:[%s11 + $0x58] sm:$0xff]
  %v466 = vld [vmem:[%s11 + $0x60] sm:$0xff]
  %v467 = vld [vmem:[%s11 + $0x68] sm:$0xff]
  %v468 = vld [vmem:[%s11 + $0x70] sm:$0xff]
  %v469 = vld [vmem:[%s11 + $0x78] sm:$0xff]
  %v470 = vld [vmem:[#allocation2] sm:$0xff]
  %v471 = vld [vmem:[#allocation2 + $0x8] sm:$0x3f]
  %473 = vset.pattern.permute.xlu0 0
  %474 = vperm.xlu0 %473, %v449
  %v475 = vpop.permute.xlu0 %474
  %478 = vset.pattern.permute.xlu0 0
  %479 = vperm.xlu0 %478, %v450
  %v480 = vpop.permute.xlu0 %479
  %v482 = vmul.f32 %v470, %v475
  %v483 = vmul.f32 %v471, %v480
  %485 = vset.pattern.permute.xlu0 0
  %486 = vperm.xlu0 %485, %v451
  %v487 = vpop.permute.xlu0 %486
  %490 = vset.pattern.permute.xlu0 0
  %491 = vperm.xlu0 %490, %v452
  %v492 = vpop.permute.xlu0 %491
  %v494 = vadd.f32 %v482, %v487
  %v495 = vadd.f32 %v483, %v492
  %v496 = vmax.f32 %v494, 0.0
  %v497 = vmax.f32 %v495, 0.0
  %vm498 = vcmask 113664
  %v500 = vsel %vm498, %v453, 0
  %v503 = vsel %vm144, %v497, 0
  %505 = vmatprep.subr.mxu0 0.0
  %506 = vmatpush1.msra.mxu0 %v496
  %507 = vmatprep.subr.mxu0 0.0
  %508 = vmatpush1.msra.mxu0 %v503
  %509 = vmatprep.subr.mxu0 0.0
  %510 = vmatpush1.msra.mxu0 0.0
  %511 = vmatprep.subr.mxu0 0.0
  %512 = vmatpush1.msra.mxu0 0.0
  %513 = vmatprep.subr.mxu0 0.0
  %514 = vmatpush1.msra.mxu0 0.0
  %515 = vmatprep.subr.mxu0 0.0
  %516 = vmatpush1.msra.mxu0 0.0
  %517 = vmatprep.subr.mxu0 0.0
  %518 = vmatpush1.msra.mxu0 0.0
  %519 = vmatprep.subr.mxu0 0.0
  %520 = vmatpush1.msra.mxu0 0.0
  %521 = vmatprep.subr.mxu0 0.0
  %522 = vmatpush1.msra.mxu0 0.0
  %523 = vmatprep.subr.mxu0 0.0
  %524 = vmatpush1.msra.mxu0 0.0
  %525 = vmatprep.subr.mxu0 0.0
  %526 = vmatpush1.msra.mxu0 0.0
  %527 = vmatprep.subr.mxu0 0.0
  %528 = vmatpush1.msra.mxu0 0.0
  %529 = vmatprep.subr.mxu0 0.0
  %530 = vmatpush1.msra.mxu0 0.0
  %531 = vmatprep.subr.mxu0 0.0
  %532 = vmatpush1.msra.mxu0 0.0
  %533 = vmatprep.subr.mxu0 0.0
  %534 = vmatpush1.msra.mxu0 0.0
  %535 = vmatprep.subr.mxu0 0.0
  %536 = vmatpush1.msra.mxu0 0.0
  %537 = vmatprep.subr.mxu0 0.0
  %538 = vmatpush1.msra.mxu0 0.0
  %539 = vmatprep.subr.mxu0 0.0
  %540 = vmatpush1.msra.mxu0 0.0
  %541 = vmatprep.subr.mxu0 0.0
  %542 = vmatpush1.msra.mxu0 0.0
  %543 = vmatprep.subr.mxu0 0.0
  %544 = vmatpush1.msra.mxu0 0.0
  %545 = vmatprep.subr.mxu0 0.0
  %546 = vmatpush1.msra.mxu0 0.0
  %547 = vmatprep.subr.mxu0 0.0
  %548 = vmatpush1.msra.mxu0 0.0
  %549 = vmatprep.subr.mxu0 0.0
  %550 = vmatpush1.msra.mxu0 0.0
  %551 = vmatprep.subr.mxu0 0.0
  %552 = vmatpush1.msra.mxu0 0.0
  %553 = vmatprep.subr.mxu0 0.0
  %554 = vmatpush1.msra.mxu0 0.0
  %555 = vmatprep.subr.mxu0 0.0
  %556 = vmatpush1.msra.mxu0 0.0
  %557 = vmatprep.subr.mxu0 0.0
  %558 = vmatpush1.msra.mxu0 0.0
  %559 = vmatprep.subr.mxu0 0.0
  %560 = vmatpush1.msra.mxu0 0.0
  %561 = vmatprep.subr.mxu0 0.0
  %562 = vmatpush1.msra.mxu0 0.0
  %563 = vmatprep.subr.mxu0 0.0
  %564 = vmatpush1.msra.mxu0 0.0
  %565 = vmatprep.subr.mxu0 0.0
  %566 = vmatpush1.msra.mxu0 0.0
  %567 = vmatprep.subr.mxu0 0.0
  %568 = vmatpush1.msra.mxu0 0.0
  %569 = vmatprep.mubr.f32.mxu0 0.0
  %570 = vmatmul.mubr.f32.gmra.mrb[0].mxu0 %v500
  %v571 = vpop.f32.mrb[0].mxu0
  %v572 = vadd.f32 0.0, %v571
  %v573 = vpop.f32.mrb[0].mxu0
  %574 = vdwg.mxu0
  %575 = vmatprep.subr.mxu0 0.0
  %576 = vmatpush1.msra.mxu0 %v454
  %577 = vmatprep.subr.mxu0 0.0
  %578 = vmatpush1.msra.mxu0 %v455
  %579 = vmatprep.subr.mxu0 0.0
  %580 = vmatpush1.msra.mxu0 %v456
  %581 = vmatprep.subr.mxu0 0.0
  %582 = vmatpush1.msra.mxu0 %v457
  %583 = vmatprep.subr.mxu0 0.0
  %584 = vmatpush1.msra.mxu0 %v458
  %585 = vmatprep.subr.mxu0 0.0
  %586 = vmatpush1.msra.mxu0 %v459
  %587 = vmatprep.subr.mxu0 0.0
  %588 = vmatpush1.msra.mxu0 %v460
  %589 = vmatprep.subr.mxu0 0.0
  %590 = vmatpush1.msra.mxu0 %v461
  %591 = vmatprep.subr.mxu0 0.0
  %592 = vmatpush1.msra.mxu0 %v462
  %593 = vmatprep.subr.mxu0 0.0
  %594 = vmatpush1.msra.mxu0 %v463
  %595 = vmatprep.subr.mxu0 0.0
  %596 = vmatpush1.msra.mxu0 %v464
  %597 = vmatprep.subr.mxu0 0.0
  %598 = vmatpush1.msra.mxu0 %v465
  %599 = vmatprep.subr.mxu0 0.0
  %600 = vmatpush1.msra.mxu0 %v466
  %601 = vmatprep.subr.mxu0 0.0
  %602 = vmatpush1.msra.mxu0 %v467
  %603 = vmatprep.subr.mxu0 0.0
  %604 = vmatpush1.msra.mxu0 %v468
  %605 = vmatprep.subr.mxu0 0.0
  %606 = vmatpush1.msra.mxu0 %v469
  %607 = vmatprep.subr.mxu0 0.0
  %608 = vmatpush1.msra.mxu0 0.0
  %609 = vmatprep.subr.mxu0 0.0
  %610 = vmatpush1.msra.mxu0 0.0
  %611 = vmatprep.subr.mxu0 0.0
  %612 = vmatpush1.msra.mxu0 0.0
  %613 = vmatprep.subr.mxu0 0.0
  %614 = vmatpush1.msra.mxu0 0.0
  %615 = vmatprep.subr.mxu0 0.0
  %616 = vmatpush1.msra.mxu0 0.0
  %617 = vmatprep.subr.mxu0 0.0
  %618 = vmatpush1.msra.mxu0 0.0
  %619 = vmatprep.subr.mxu0 0.0
  %620 = vmatpush1.msra.mxu0 0.0
  %621 = vmatprep.subr.mxu0 0.0
  %622 = vmatpush1.msra.mxu0 0.0
  %623 = vmatprep.subr.mxu0 0.0
  %624 = vmatpush1.msra.mxu0 0.0
  %625 = vmatprep.subr.mxu0 0.0
  %626 = vmatpush1.msra.mxu0 0.0
  %627 = vmatprep.subr.mxu0 0.0
  %628 = vmatpush1.msra.mxu0 0.0
  %629 = vmatprep.subr.mxu0 0.0
  %630 = vmatpush1.msra.mxu0 0.0
  %631 = vmatprep.subr.mxu0 0.0
  %632 = vmatpush1.msra.mxu0 0.0
  %633 = vmatprep.subr.mxu0 0.0
  %634 = vmatpush1.msra.mxu0 0.0
  %635 = vmatprep.subr.mxu0 0.0
  %636 = vmatpush1.msra.mxu0 0.0
  %637 = vmatprep.subr.mxu0 0.0
  %638 = vmatpush1.msra.mxu0 0.0
  %639 = vmatprep.mubr.f32.mxu0 0.0
  %640 = vmatmul.mubr.f32.gmra.mrb[0].mxu0 %v572
  %v641 = vpop.f32.mrb[0].mxu0
  %v642 = vadd.f32 0.0, %v641
  %v643 = vpop.f32.mrb[0].mxu0
  %644 = vdwg.mxu0
  %vm645 = vcmask 260096
  %646 = vst.msk [vmem:[%s12] sm:$0x7f] %vm645, %v642
  // Predicated region
  $region50: #{make_blocks_forward.3} parent=0 // pred_check
    _
  $region51: #{make_blocks_forward.3} parent=0 // pred_check_branch
    %648 = sbr.rel (0) target = $region53
  $region52: #{make_blocks_forward.3} parent=0 // pred_region
    _
  $region53: #{make_blocks_forward.3} parent=0 // pred_fallthru
    _
  // Predicated region
  $region54: #{make_blocks_forward.3} parent=0 // pred_check
    _
  $region55: #{make_blocks_forward.3} parent=0 // pred_check_branch
    %650 = sbr.rel (0) target = $region57
  $region56: #{make_blocks_forward.3} parent=0 // pred_region
    _
  $region57: #{make_blocks_forward.3} parent=0 // pred_fallthru
    _

// kernel: make_blocks_forward.2
$region0: #{make_blocks_forward.2}
  #allocation0 [shape = 'u32[]', space=smem, size = 0x4, offset = 0x4, fixed_abs, tag = 'smem constant byte address 0x4 - core index']
  #allocation1 [shape = 'u32[144,128]{1,0:T(1,128)}', space=vmem, size = 0x12000, scoped, tag = 'internal scratch']
  #allocation2 [shape = 'f32[12,512]{1,0:T(8,128)}', space=vmem, size = 0x8000, scoped, tag = 'scratch operand']
  #allocation3 [shape = 'f32[72,512]{1,0:T(8,128)}', space=vmem, size = 0x24000, scoped, tag = 'scratch operand']
  %s0 = inlined_call_operand.vmem [shape: f32[4,512], index: 0, kind: input, shape index: {}]
  %s1 = inlined_call_operand.vmem [shape: f32[9,512], index: 1, kind: input, shape index: {}]
  %s2 = inlined_call_operand.vmem [shape: f32[4,1], index: 2, kind: input, shape index: {}]
  %s3 = inlined_call_operand.vmem [shape: f32[4,1], index: 3, kind: input, shape index: {}]
  %s4 = inlined_call_operand.vmem [shape: f32[4,36], index: 4, kind: input, shape index: {}]
  %s5 = inlined_call_operand.vmem [shape: f32[8,1], index: 5, kind: input, shape index: {}]
  %s6 = inlined_call_operand.vmem [shape: f32[8,1], index: 6, kind: input, shape index: {}]
  %s7 = inlined_call_operand.vmem [shape: f32[4,72], index: 7, kind: input, shape index: {}]
  %s8 = inlined_call_operand.vmem [shape: f32[12,1], index: 8, kind: input, shape index: {}]
  %s9 = inlined_call_operand.vmem [shape: f32[12,1], index: 9, kind: input, shape index: {}]
  %s10 = inlined_call_operand.vmem [shape: f32[6,12], index: 10, kind: input, shape index: {}]
  %s11 = inlined_call_operand.hbm [shape: f32[512,128], index: 11, kind: input, shape index: {}]
  %s12 = inlined_call_operand.vmem [shape: f32[6,128], index: 12, kind: output, shape index: {}]
  %s13 = sld [smem:[#allocation0]]
  $region62: #{make_blocks_forward.2} parent=0
    _
  %s15 = ssub.s32 1, %s13
  %s16 = scalar_select 0, %s15, %s13
  $region1: #{make_blocks_forward.2} parent=0
    #allocation4 [shape = 'u8[262144]{0}', space=vmem, size = 0x40000, scoped, tag = 'input window, operand 11, single buffered']
    #allocation5 [shape = 's32[1]{0}', space=sflag, size = 0x4, scoped, tag = 'scoped memory for make_blocks_forward.2']
    %17 = vsyncpa [#allocation5], 0
    // Predicated region
    $region2: #{make_blocks_forward.2} parent=1 // pred_check
      _
    $region3: #{make_blocks_forward.2} parent=1 // pred_check_branch
      %19 = sbr.rel (0) target = $region5
    $region4: #{make_blocks_forward.2} parent=1 // pred_region
      _
    $region5: #{make_blocks_forward.2} parent=1 // pred_fallthru
      _
    // Predicated region
    $region6: #{make_blocks_forward.2} parent=1 // pred_check
      _
    $region7: #{make_blocks_forward.2} parent=1 // pred_check_branch
      %21 = sbr.rel (0) target = $region9
    $region8: #{make_blocks_forward.2} parent=1 // pred_region
      _
    $region9: #{make_blocks_forward.2} parent=1 // pred_fallthru
      _
    // Predicated region
    $region10: #{make_blocks_forward.2} parent=1 // pred_check
      _
    $region11: #{make_blocks_forward.2} parent=1 // pred_check_branch
      %23 = sbr.rel (0) target = $region13
    $region12: #{make_blocks_forward.2} parent=1 // pred_region
      _
    $region13: #{make_blocks_forward.2} parent=1 // pred_fallthru
      _
    // Predicated region
    $region14: #{make_blocks_forward.2} parent=1 // pred_check
      _
    $region15: #{make_blocks_forward.2} parent=1 // pred_check_branch
      %25 = sbr.rel (0) target = $region17
    $region16: #{make_blocks_forward.2} parent=1 // pred_region
      _
    $region17: #{make_blocks_forward.2} parent=1 // pred_fallthru
      _
    // Predicated region
    $region18: #{make_blocks_forward.2} parent=1 // pred_check
      _
    $region19: #{make_blocks_forward.2} parent=1 // pred_check_branch
      %27 = sbr.rel (0) target = $region21
    $region20: #{make_blocks_forward.2} parent=1 // pred_region
      _
    $region21: #{make_blocks_forward.2} parent=1 // pred_fallthru
      _
    // Predicated region
    $region22: #{make_blocks_forward.2} parent=1 // pred_check
      _
    $region23: #{make_blocks_forward.2} parent=1 // pred_check_branch
      %29 = sbr.rel (0) target = $region25
    $region24: #{make_blocks_forward.2} parent=1 // pred_region
      _
    $region25: #{make_blocks_forward.2} parent=1 // pred_fallthru
      _
    // Predicated region
    $region26: #{make_blocks_forward.2} parent=1 // pred_check
      _
    $region27: #{make_blocks_forward.2} parent=1 // pred_check_branch
      %31 = sbr.rel (0) target = $region29
    $region28: #{make_blocks_forward.2} parent=1 // pred_region
      _
    $region29: #{make_blocks_forward.2} parent=1 // pred_fallthru
      _
    // Predicated region
    $region30: #{make_blocks_forward.2} parent=1 // pred_check
      _
    $region31: #{make_blocks_forward.2} parent=1 // pred_check_branch
      %33 = sbr.rel (0) target = $region33
    $region32: #{make_blocks_forward.2} parent=1 // pred_region
      _
    $region33: #{make_blocks_forward.2} parent=1 // pred_fallthru
      _
    // Predicated region
    $region34: #{make_blocks_forward.2} parent=1 // pred_check
      _
    $region35: #{make_blocks_forward.2} parent=1 // pred_check_branch
      %35 = sbr.rel (0) target = $region37
    $region36: #{make_blocks_forward.2} parent=1 // pred_region
      _
    $region37: #{make_blocks_forward.2} parent=1 // pred_fallthru
      _
    // Predicated region
    $region38: #{make_blocks_forward.2} parent=1 // pred_check
      _
    $region39: #{make_blocks_forward.2} parent=1 // pred_check_branch
      %37 = sbr.rel (0) target = $region41
    $region40: #{make_blocks_forward.2} parent=1 // pred_region
      _
    $region41: #{make_blocks_forward.2} parent=1 // pred_fallthru
      _
    // Predicated region
    $region42: #{make_blocks_forward.2} parent=1 // pred_check
      _
    $region43: #{make_blocks_forward.2} parent=1 // pred_check_branch
      %39 = sbr.rel (0) target = $region45
    $region44: #{make_blocks_forward.2} parent=1 // pred_region
      _
    $region45: #{make_blocks_forward.2} parent=1 // pred_fallthru
      _
    // Predicated region
    $region46: #{make_blocks_forward.2} parent=1 // pred_check
      _
    $region47: #{make_blocks_forward.2} parent=1 // pred_check_branch
      %41 = sbr.rel (0) target = $region49
    $region48: #{make_blocks_forward.2} parent=1 // pred_region
      %s43 = ssub.s32 8192, 8192
      %44 = vsyncadd [#allocation5], %s43
      %s45 = sshll.u32 [#allocation4], 4
      %s46 = int_to_ptr.vmem [resolvable:$true] %s45
      %51 = dma.hbm_to_vmem [thread:$0]  %s11, 8192, %s46, [#allocation5], 128, 128, 8
    $region49: #{make_blocks_forward.2} parent=1 // pred_fallthru
      _
    // Predicated region
    $region50: #{make_blocks_forward.2} parent=1 // pred_check
      _
    $region51: #{make_blocks_forward.2} parent=1 // pred_check_branch
      %53 = sbr.rel (0) target = $region53
    $region52: #{make_blocks_forward.2} parent=1 // pred_region
      %54 = dma.done [#allocation5], 8192
    $region53: #{make_blocks_forward.2} parent=1 // pred_fallthru
      _
    %v55 = vld [vmem:[%s0] sm:$0xff]
    %v56 = vld [vmem:[%s0 + $0x8] sm:$0xff]
    %v59 = vcombine.high %v55, %v55
    %v60 = vcombine.high %v56, %v56
    %63 = vst [vmem:[#allocation2] sm:$0xf] %v55
    %64 = vst [vmem:[#allocation2 + $0x8] sm:$0xf] %v59
    %65 = vst [vmem:[#allocation2 + $0x10] sm:$0xf] %v56
    %66 = vst [vmem:[#allocation2 + $0x18] sm:$0xf] %v60
    %v67 = vld [vmem:[%s2] sm:$0xf]
    %v68 = vld [vmem:[%s3] sm:$0xf]
    %v69 = vld [vmem:[%s4] sm:$0xf]
    %v70 = vld [vmem:[#allocation2] sm:$0xf]
    %v71 = vld [vmem:[#allocation2 + $0x8] sm:$0xf]
    %v72 = vld [vmem:[#allocation2 + $0x10] sm:$0xf]
    %v73 = vld [vmem:[#allocation2 + $0x18] sm:$0xf]
    %75 = vset.pattern.permute.xlu0 0
    %76 = vperm.xlu0 %75, %v67
    %v77 = vpop.permute.xlu0 %76
    %v79 = vmul.f32 %v70, %v77
    %v80 = vmul.f32 %v71, %v77
    %v81 = vmul.f32 %v72, %v77
    %v82 = vmul.f32 %v73, %v77
    %84 = vset.pattern.permute.xlu0 0
    %85 = vperm.xlu0 %84, %v68
    %v86 = vpop.permute.xlu0 %85
    %v88 = vadd.f32 %v79, %v86
    %v89 = vadd.f32 %v80, %v86
    %v90 = vadd.f32 %v81, %v86
    %v91 = vadd.f32 %v82, %v86
    %v92 = vmax.f32 %v88, 0.0
    %v93 = vmax.f32 %v89, 0.0
    %v94 = vmax.f32 %v90, 0.0
    %v95 = vmax.f32 %v91, 0.0
    %96 = vrot.lane.b32.xlu0 %v92, 17
    %v97 = vpop.permute.xlu0 %96
    %98 = vrot.lane.b32.xlu0 %v93, 17
    %v99 = vpop.permute.xlu0 %98
    %100 = vrot.lane.b32.xlu0 %v94, 17
    %v101 = vpop.permute.xlu0 %100
    %102 = vrot.lane.b32.xlu0 %v95, 17
    %v103 = vpop.permute.xlu0 %102
    %v104 = vlaneseq
    %v105 = vand.u32 %v104, 127
    %vm106 = vcmp.lt.s32.totalorder %v105, 17
    %v107 = vsel %vm106, %v101, %v103
    %v108 = vsel %vm106, %v99, %v101
    %v109 = vsel %vm106, %v97, %v99
    %v110 = vsel %vm106, %v103, %v97
    %v111 = vld [vmem:[%s1] ss:$8 sm:$0xf]
    %v113 = vlaneseq
    %v114 = vshrl.u32 %v113, 7
    %v115 = vsub.s32 0, %v114
    %v116 = vrot.slane %v111, %v115
    %v117 = vlaneseq
    %v118 = vshrl.u32 %v117, 7
    %v119 = vsub.s32 1, %v118
    %v120 = vrot.slane %v111, %v119
    %v121 = vlaneseq
    %v122 = vshrl.u32 %v121, 7
    %v123 = vsub.s32 2, %v122
    %v124 = vrot.slane %v111, %v123
    %v125 = vlaneseq
    %v126 = vshrl.u32 %v125, 7
    %v127 = vsub.s32 3, %v126
    %v128 = vrot.slane %v111, %v127
    %v133 = vmul.f32 %v110, %v116
    %v134 = vmul.f32 %v109, %v120
    %v135 = vmul.f32 %v108, %v124
    %v136 = vmul.f32 %v107, %v128
    %137 = vst [vmem:[#allocation3] sm:$0xf] %v133
    %138 = vst [vmem:[#allocation3 + $0x8] sm:$0xf] %v134
    %139 = vst [vmem:[#allocation3 + $0x10] sm:$0xf] %v135
    %140 = vst [vmem:[#allocation3 + $0x18] sm:$0xf] %v136
    %141 = vrot.lane.b32.xlu0 %v92, 16
    %v142 = vpop.permute.xlu0 %141
    %143 = vrot.lane.b32.xlu0 %v93, 16
    %v144 = vpop.permute.xlu0 %143
    %145 = vrot.lane.b32.xlu0 %v94, 16
    %v146 = vpop.permute.xlu0 %145
    %147 = vrot.lane.b32.xlu0 %v95, 16
    %v148 = vpop.permute.xlu0 %147
    %vm149 = vcmp.lt.s32.totalorder %v105, 16
    %v150 = vsel %vm149, %v146, %v148
    %v151 = vsel %vm149, %v144, %v146
    %v152 = vsel %vm149, %v142, %v144
    %v153 = vsel %vm149, %v148, %v142
    %s154 = scalar_lea.vmem %s1, 1
    %v155 = vld [vmem:[%s154] ss:$8 sm:$0xf]
    %v157 = vlaneseq
    %v158 = vshrl.u32 %v157, 7
    %v159 = vsub.s32 0, %v158
    %v160 = vrot.slane %v155, %v159
    %v161 = vlaneseq
    %v162 = vshrl.u32 %v161, 7
    %v163 = vsub.s32 1, %v162
    %v164 = vrot.slane %v155, %v163
    %v165 = vlaneseq
    %v166 = vshrl.u32 %v165, 7
    %v167 = vsub.s32 2, %v166
    %v168 = vrot.slane %v155, %v167
    %v169 = vlaneseq
    %v170 = vshrl.u32 %v169, 7
    %v171 = vsub.s32 3, %v170
    %v172 = vrot.slane %v155, %v171
    %v177 = vmul.f32 %v153, %v160
    %v178 = vmul.f32 %v152, %v164
    %v179 = vmul.f32 %v151, %v168
    %v180 = vmul.f32 %v150, %v172
    %v185 = vrot.slane %v177, 4
    %v186 = vrot.slane %v178, 4
    %v187 = vrot.slane %v179, 4
    %v188 = vrot.slane %v180, 4
    %193 = vst [vmem:[#allocation3] sm:$0xf0] %v185
    %194 = vst [vmem:[#allocation3 + $0x8] sm:$0xf0] %v186
    %195 = vst [vmem:[#allocation3 + $0x10] sm:$0xf0] %v187
    %196 = vst [vmem:[#allocation3 + $0x18] sm:$0xf0] %v188
    %197 = vrot.lane.b32.xlu0 %v92, 15
    %v198 = vpop.permute.xlu0 %197
    %199 = vrot.lane.b32.xlu0 %v93, 15
    %v200 = vpop.permute.xlu0 %199
    %201 = vrot.lane.b32.xlu0 %v94, 15
    %v202 = vpop.permute.xlu0 %201
    %203 = vrot.lane.b32.xlu0 %v95, 15
    %v204 = vpop.permute.xlu0 %203
    %vm205 = vcmp.lt.s32.totalorder %v105, 15
    %v206 = vsel %vm205, %v202, %v204
    %v207 = vsel %vm205, %v200, %v202
    %v208 = vsel %vm205, %v198, %v200
    %v209 = vsel %vm205, %v204, %v198
    %s210 = scalar_lea.vmem %s1, 2
    %v211 = vld [vmem:[%s210] ss:$8 sm:$0xf]
    %v213 = vlaneseq
    %v214 = vshrl.u32 %v213, 7
    %v215 = vsub.s32 0, %v214
    %v216 = vrot.slane %v211, %v215
    %v217 = vlaneseq
    %v218 = vshrl.u32 %v217, 7
    %v219 = vsub.s32 1, %v218
    %v220 = vrot.slane %v211, %v219
    %v221 = vlaneseq
    %v222 = vshrl.u32 %v221, 7
    %v223 = vsub.s32 2, %v222
    %v224 = vrot.slane %v211, %v223
    %v225 = vlaneseq
    %v226 = vshrl.u32 %v225, 7
    %v227 = vsub.s32 3, %v226
    %v228 = vrot.slane %v211, %v227
    %v233 = vmul.f32 %v209, %v216
    %v234 = vmul.f32 %v208, %v220
    %v235 = vmul.f32 %v207, %v224
    %v236 = vmul.f32 %v206, %v228
    %237 = vst [vmem:[#allocation3 + $0x20] sm:$0xf] %v233
    %238 = vst [vmem:[#allocation3 + $0x28] sm:$0xf] %v234
    %239 = vst [vmem:[#allocation3 + $0x30] sm:$0xf] %v235
    %240 = vst [vmem:[#allocation3 + $0x38] sm:$0xf] %v236
    %241 = vrot.lane.b32.xlu0 %v92, 1
    %v242 = vpop.permute.xlu0 %241
    %243 = vrot.lane.b32.xlu0 %v93, 1
    %v244 = vpop.permute.xlu0 %243
    %245 = vrot.lane.b32.xlu0 %v94, 1
    %v246 = vpop.permute.xlu0 %245
    %247 = vrot.lane.b32.xlu0 %v95, 1
    %v248 = vpop.permute.xlu0 %247
    %vm249 = vcmp.lt.s32.totalorder %v105, 1
    %v250 = vsel %vm249, %v246, %v248
    %v251 = vsel %vm249, %v244, %v246
    %v252 = vsel %vm249, %v242, %v244
    %v253 = vsel %vm249, %v248, %v242
    %s254 = scalar_lea.vmem %s1, 3
    %v255 = vld [vmem:[%s254] ss:$8 sm:$0xf]
    %v257 = vlaneseq
    %v258 = vshrl.u32 %v257, 7
    %v259 = vsub.s32 0, %v258
    %v260 = vrot.slane %v255, %v259
    %v261 = vlaneseq
    %v262 = vshrl.u32 %v261, 7
    %v263 = vsub.s32 1, %v262
    %v264 = vrot.slane %v255, %v263
    %v265 = vlaneseq
    %v266 = vshrl.u32 %v265, 7
    %v267 = vsub.s32 2, %v266
    %v268 = vrot.slane %v255, %v267
    %v269 = vlaneseq
    %v270 = vshrl.u32 %v269, 7
    %v271 = vsub.s32 3, %v270
    %v272 = vrot.slane %v255, %v271
    %v277 = vmul.f32 %v253, %v260
    %v278 = vmul.f32 %v252, %v264
    %v279 = vmul.f32 %v251, %v268
    %v280 = vmul.f32 %v250, %v272
    %v285 = vrot.slane %v277, 4
    %v286 = vrot.slane %v278, 4
    %v287 = vrot.slane %v279, 4
    %v288 = vrot.slane %v280, 4
    %293 = vst [vmem:[#allocation3 + $0x20] sm:$0xf0] %v285
    %294 = vst [vmem:[#allocation3 + $0x28] sm:$0xf0] %v286
    %295 = vst [vmem:[#allocation3 + $0x30] sm:$0xf0] %v287
    %296 = vst [vmem:[#allocation3 + $0x38] sm:$0xf0] %v288
    %297 = vst [vmem:[#allocation3 + $0x40] sm:$0xf] %v92
    %298 = vst [vmem:[#allocation3 + $0x48] sm:$0xf] %v93
    %299 = vst [vmem:[#allocation3 + $0x50] sm:$0xf] %v94
    %300 = vst [vmem:[#allocation3 + $0x58] sm:$0xf] %v95
    %301 = vrot.lane.b32.xlu0 %v92, 127
    %v302 = vpop.permute.xlu0 %301
    %303 = vrot.lane.b32.xlu0 %v93, 127
    %v304 = vpop.permute.xlu0 %303
    %305 = vrot.lane.b32.xlu0 %v94, 127
    %v306 = vpop.permute.xlu0 %305
    %307 = vrot.lane.b32.xlu0 %v95, 127
    %v308 = vpop.permute.xlu0 %307
    %vm309 = vcmp.lt.s32.totalorder %v105, 127
    %v310 = vsel %vm309, %v306, %v308
    %v311 = vsel %vm309, %v304, %v306
    %v312 = vsel %vm309, %v302, %v304
    %v313 = vsel %vm309, %v308, %v302
    %s314 = scalar_lea.vmem %s1, 5
    %v315 = vld [vmem:[%s314] ss:$8 sm:$0xf]
    %v317 = vlaneseq
    %v318 = vshrl.u32 %v317, 7
    %v319 = vsub.s32 0, %v318
    %v320 = vrot.slane %v315, %v319
    %v321 = vlaneseq
    %v322 = vshrl.u32 %v321, 7
    %v323 = vsub.s32 1, %v322
    %v324 = vrot.slane %v315, %v323
    %v325 = vlaneseq
    %v326 = vshrl.u32 %v325, 7
    %v327 = vsub.s32 2, %v326
    %v328 = vrot.slane %v315, %v327
    %v329 = vlaneseq
    %v330 = vshrl.u32 %v329, 7
    %v331 = vsub.s32 3, %v330
    %v332 = vrot.slane %v315, %v331
    %v337 = vmul.f32 %v312, %v320
    %v338 = vmul.f32 %v311, %v324
    %v339 = vmul.f32 %v310, %v328
    %v340 = vmul.f32 %v313, %v332
    %v345 = vrot.slane %v337, 4
    %v346 = vrot.slane %v338, 4
    %v347 = vrot.slane %v339, 4
    %v348 = vrot.slane %v340, 4
    %353 = vst [vmem:[#allocation3 + $0x40] sm:$0xf0] %v345
    %354 = vst [vmem:[#allocation3 + $0x48] sm:$0xf0] %v346
    %355 = vst [vmem:[#allocation3 + $0x50] sm:$0xf0] %v347
    %356 = vst [vmem:[#allocation3 + $0x58] sm:$0xf0] %v348
    %357 = vrot.lane.b32.xlu0 %v92, 113
    %v358 = vpop.permute.xlu0 %357
    %359 = vrot.lane.b32.xlu0 %v93, 113
    %v360 = vpop.permute.xlu0 %359
    %361 = vrot.lane.b32.xlu0 %v94, 113
    %v362 = vpop.permute.xlu0 %361
    %363 = vrot.lane.b32.xlu0 %v95, 113
    %v364 = vpop.permute.xlu0 %363
    %vm365 = vcmp.lt.s32.totalorder %v105, 113
    %v366 = vsel %vm365, %v362, %v364
    %v367 = vsel %vm365, %v360, %v362
    %v368 = vsel %vm365, %v358, %v360
    %v369 = vsel %vm365, %v364, %v358
    %s370 = scalar_lea.vmem %s1, 6
    %v371 = vld [vmem:[%s370] ss:$8 sm:$0xf]
    %v373 = vlaneseq
    %v374 = vshrl.u32 %v373, 7
    %v375 = vsub.s32 0, %v374
    %v376 = vrot.slane %v371, %v375
    %v377 = vlaneseq
    %v378 = vshrl.u32 %v377, 7
    %v379 = vsub.s32 1, %v378
    %v380 = vrot.slane %v371, %v379
    %v381 = vlaneseq
    %v382 = vshrl.u32 %v381, 7
    %v383 = vsub.s32 2, %v382
    %v384 = vrot.slane %v371, %v383
    %v385 = vlaneseq
    %v386 = vshrl.u32 %v385, 7
    %v387 = vsub.s32 3, %v386
    %v388 = vrot.slane %v371, %v387
    %v393 = vmul.f32 %v368, %v376
    %v394 = vmul.f32 %v367, %v380
    %v395 = vmul.f32 %v366, %v384
    %v396 = vmul.f32 %v369, %v388
    %397 = vst [vmem:[#allocation3 + $0x60] sm:$0xf] %v393
    %398 = vst [vmem:[#allocation3 + $0x68] sm:$0xf] %v394
    %399 = vst [vmem:[#allocation3 + $0x70] sm:$0xf] %v395
    %400 = vst [vmem:[#allocation3 + $0x78] sm:$0xf] %v396
    %401 = vrot.lane.b32.xlu0 %v92, 112
    %v402 = vpop.permute.xlu0 %401
    %403 = vrot.lane.b32.xlu0 %v93, 112
    %v404 = vpop.permute.xlu0 %403
    %405 = vrot.lane.b32.xlu0 %v94, 112
    %v406 = vpop.permute.xlu0 %405
    %407 = vrot.lane.b32.xlu0 %v95, 112
    %v408 = vpop.permute.xlu0 %407
    %vm409 = vcmp.lt.s32.totalorder %v105, 112
    %v410 = vsel %vm409, %v406, %v408
    %v411 = vsel %vm409, %v404, %v406
    %v412 = vsel %vm409, %v402, %v404
    %v413 = vsel %vm409, %v408, %v402
    %s414 = scalar_lea.vmem %s1, 7
    %v415 = vld [vmem:[%s414] ss:$8 sm:$0xf]
    %v417 = vlaneseq
    %v418 = vshrl.u32 %v417, 7
    %v419 = vsub.s32 0, %v418
    %v420 = vrot.slane %v415, %v419
    %v421 = vlaneseq
    %v422 = vshrl.u32 %v421, 7
    %v423 = vsub.s32 1, %v422
    %v424 = vrot.slane %v415, %v423
    %v425 = vlaneseq
    %v426 = vshrl.u32 %v425, 7
    %v427 = vsub.s32 2, %v426
    %v428 = vrot.slane %v415, %v427
    %v429 = vlaneseq
    %v430 = vshrl.u32 %v429, 7
    %v431 = vsub.s32 3, %v430
    %v432 = vrot.slane %v415, %v431
    %v437 = vmul.f32 %v412, %v420
    %v438 = vmul.f32 %v411, %v424
    %v439 = vmul.f32 %v410, %v428
    %v440 = vmul.f32 %v413, %v432
    %v445 = vrot.slane %v437, 4
    %v446 = vrot.slane %v438, 4
    %v447 = vrot.slane %v439, 4
    %v448 = vrot.slane %v440, 4
    %453 = vst [vmem:[#allocation3 + $0x60] sm:$0xf0] %v445
    %454 = vst [vmem:[#allocation3 + $0x68] sm:$0xf0] %v446
    %455 = vst [vmem:[#allocation3 + $0x70] sm:$0xf0] %v447
    %456 = vst [vmem:[#allocation3 + $0x78] sm:$0xf0] %v448
    %457 = vrot.lane.b32.xlu0 %v92, 111
    %v458 = vpop.permute.xlu0 %457
    %459 = vrot.lane.b32.xlu0 %v93, 111
    %v460 = vpop.permute.xlu0 %459
    %461 = vrot.lane.b32.xlu0 %v94, 111
    %v462 = vpop.permute.xlu0 %461
    %463 = vrot.lane.b32.xlu0 %v95, 111
    %v464 = vpop.permute.xlu0 %463
    %vm465 = vcmp.lt.s32.totalorder %v105, 111
    %v466 = vsel %vm465, %v462, %v464
    %v467 = vsel %vm465, %v460, %v462
    %v468 = vsel %vm465, %v458, %v460
    %v469 = vsel %vm465, %v464, %v458
    %s470 = scalar_lea.vmem %s1, 32
    %v471 = vld [vmem:[%s470] ss:$8 sm:$0xf]
    %v473 = vlaneseq
    %v474 = vshrl.u32 %v473, 7
    %v475 = vsub.s32 0, %v474
    %v476 = vrot.slane %v471, %v475
    %v477 = vlaneseq
    %v478 = vshrl.u32 %v477, 7
    %v479 = vsub.s32 1, %v478
    %v480 = vrot.slane %v471, %v479
    %v481 = vlaneseq
    %v482 = vshrl.u32 %v481, 7
    %v483 = vsub.s32 2, %v482
    %v484 = vrot.slane %v471, %v483
    %v485 = vlaneseq
    %v486 = vshrl.u32 %v485, 7
    %v487 = vsub.s32 3, %v486
    %v488 = vrot.slane %v471, %v487
    %v493 = vmul.f32 %v468, %v476
    %v494 = vmul.f32 %v467, %v480
    %v495 = vmul.f32 %v466, %v484
    %v496 = vmul.f32 %v469, %v488
    %497 = vst [vmem:[#allocation3 + $0x80] sm:$0xf] %v493
    %498 = vst [vmem:[#allocation3 + $0x88] sm:$0xf] %v494
    %499 = vst [vmem:[#allocation3 + $0x90] sm:$0xf] %v495
    %500 = vst [vmem:[#allocation3 + $0x98] sm:$0xf] %v496
    %v501 = vld [vmem:[#allocation3] sm:$0xff]
    %v502 = vld [vmem:[#allocation3 + $0x8] sm:$0xff]
    %v503 = vld [vmem:[#allocation3 + $0x10] sm:$0xff]
    %v504 = vld [vmem:[#allocation3 + $0x18] sm:$0xff]
    %v505 = vld [vmem:[#allocation3 + $0x20] sm:$0xff]
    %v506 = vld [vmem:[#allocation3 + $0x28] sm:$0xff]
    %v507 = vld [vmem:[#allocation3 + $0x30] sm:$0xff]
    %v508 = vld [vmem:[#allocation3 + $0x38] sm:$0xff]
    %v509 = vld [vmem:[#allocation3 + $0x40] sm:$0xff]
    %v510 = vld [vmem:[#allocation3 + $0x48] sm:$0xff]
    %v511 = vld [vmem:[#allocation3 + $0x50] sm:$0xff]
    %v512 = vld [vmem:[#allocation3 + $0x58] sm:$0xff]
    %v513 = vld [vmem:[#allocation3 + $0x60] sm:$0xff]
    %v514 = vld [vmem:[#allocation3 + $0x68] sm:$0xff]
    %v515 = vld [vmem:[#allocation3 + $0x70] sm:$0xff]
    %v516 = vld [vmem:[#allocation3 + $0x78] sm:$0xff]
    %v517 = vld [vmem:[#allocation3 + $0x80] sm:$0xf]
    %v518 = vld [vmem:[#allocation3 + $0x88] sm:$0xf]
    %v519 = vld [vmem:[#allocation3 + $0x90] sm:$0xf]
    %v520 = vld [vmem:[#allocation3 + $0x98] sm:$0xf]
    %vm521 = vcmask 293888
    %v523 = vsel %vm521, %v69, 0
    %vm525 = vcmask 1043456
    %v527 = vsel %vm525, %v517, 0
    %v530 = vsel %vm525, %v518, 0
    %v533 = vsel %vm525, %v519, 0
    %v536 = vsel %vm525, %v520, 0
    %538 = vmatprep.subr.mxu0 %v502
    %539 = vmatpush1.msra.mxu0 %v501
    %540 = vmatprep.subr.mxu0 %v506
    %541 = vmatpush1.msra.mxu0 %v505
    %542 = vmatprep.subr.mxu0 %v510
    %543 = vmatpush1.msra.mxu0 %v509
    %544 = vmatprep.subr.mxu0 %v514
    %545 = vmatpush1.msra.mxu0 %v513
    %546 = vmatprep.subr.mxu0 %v530
    %547 = vmatpush1.msra.mxu0 %v527
    %548 = vmatprep.subr.mxu0 0.0
    %549 = vmatpush1.msra.mxu0 0.0
    %550 = vmatprep.subr.mxu0 0.0
    %551 = vmatpush1.msra.mxu0 0.0
    %552 = vmatprep.subr.mxu0 0.0
    %553 = vmatpush1.msra.mxu0 0.0
    %554 = vmatprep.subr.mxu0 0.0
    %555 = vmatpush1.msra.mxu0 0.0
    %556 = vmatprep.subr.mxu0 0.0
    %557 = vmatpush1.msra.mxu0 0.0
    %558 = vmatprep.subr.mxu0 0.0
    %559 = vmatpush1.msra.mxu0 0.0
    %560 = vmatprep.subr.mxu0 0.0
    %561 = vmatpush1.msra.mxu0 0.0
    %562 = vmatprep.subr.mxu0 0.0
    %563 = vmatpush1.msra.mxu0 0.0
    %564 = vmatprep.subr.mxu0 0.0
    %565 = vmatpush1.msra.mxu0 0.0
    %566 = vmatprep.subr.mxu0 0.0
    %567 = vmatpush1.msra.mxu0 0.0
    %568 = vmatprep.subr.mxu0 0.0
    %569 = vmatpush1.msra.mxu0 0.0
    %570 = vmatprep.subr.mxu0 0.0
    %571 = vmatpush1.msra.mxu0 0.0
    %572 = vmatprep.subr.mxu0 0.0
    %573 = vmatpush1.msra.mxu0 0.0
    %574 = vmatprep.subr.mxu0 0.0
    %575 = vmatpush1.msra.mxu0 0.0
    %576 = vmatprep.subr.mxu0 0.0
    %577 = vmatpush1.msra.mxu0 0.0
    %578 = vmatprep.subr.mxu0 0.0
    %579 = vmatpush1.msra.mxu0 0.0
    %580 = vmatprep.subr.mxu0 0.0
    %581 = vmatpush1.msra.mxu0 0.0
    %582 = vmatprep.subr.mxu0 0.0
    %583 = vmatpush1.msra.mxu0 0.0
    %584 = vmatprep.subr.mxu0 0.0
    %585 = vmatpush1.msra.mxu0 0.0
    %586 = vmatprep.subr.mxu0 0.0
    %587 = vmatpush1.msra.mxu0 0.0
    %588 = vmatprep.subr.mxu0 0.0
    %589 = vmatpush1.msra.mxu0 0.0
    %590 = vmatprep.subr.mxu0 0.0
    %591 = vmatpush1.msra.mxu0 0.0
    %592 = vmatprep.subr.mxu0 0.0
    %593 = vmatpush1.msra.mxu0 0.0
    %594 = vmatprep.subr.mxu0 0.0
    %595 = vmatpush1.msra.mxu0 0.0
    %596 = vmatprep.subr.mxu0 0.0
    %597 = vmatpush1.msra.mxu0 0.0
    %598 = vmatprep.subr.mxu0 0.0
    %599 = vmatpush1.msra.mxu0 0.0
    %600 = vmatprep.subr.mxu0 0.0
    %601 = vmatpush1.msra.mxu0 0.0
    %602 = vmatprep.mubr.f32.mxu0 0.0
    %603 = vmatmul.mubr.f32.gmra.mrb[0].mxu0 %v523
    %v604 = vpop.f32.mrb[0].mxu0
    %v605 = vadd.f32 0.0, %v604
    %v606 = vpop.f32.mrb[0].mxu0
    %v607 = vadd.f32 0.0, %v606
    %608 = vdwg.mxu0
    %609 = vmatprep.subr.mxu0 %v504
    %610 = vmatpush1.msra.mxu0 %v503
    %611 = vmatprep.subr.mxu0 %v508
    %612 = vmatpush1.msra.mxu0 %v507
    %613 = vmatprep.subr.mxu0 %v512
    %614 = vmatpush1.msra.mxu0 %v511
    %615 = vmatprep.subr.mxu0 %v516
    %616 = vmatpush1.msra.mxu0 %v515
    %617 = vmatprep.subr.mxu0 %v536
    %618 = vmatpush1.msra.mxu0 %v533
    %619 = vmatprep.subr.mxu0 0.0
    %620 = vmatpush1.msra.mxu0 0.0
    %621 = vmatprep.subr.mxu0 0.0
    %622 = vmatpush1.msra.mxu0 0.0
    %623 = vmatprep.subr.mxu0 0.0
    %624 = vmatpush1.msra.mxu0 0.0
    %625 = vmatprep.subr.mxu0 0.0
    %626 = vmatpush1.msra.mxu0 0.0
    %627 = vmatprep.subr.mxu0 0.0
    %628 = vmatpush1.msra.mxu0 0.0
    %629 = vmatprep.subr.mxu0 0.0
    %630 = vmatpush1.msra.mxu0 0.0
    %631 = vmatprep.subr.mxu0 0.0
    %632 = vmatpush1.msra.mxu0 0.0
    %633 = vmatprep.subr.mxu0 0.0
    %634 = vmatpush1.msra.mxu0 0.0
    %635 = vmatprep.subr.mxu0 0.0
    %636 = vmatpush1.msra.mxu0 0.0
    %637 = vmatprep.subr.mxu0 0.0
    %638 = vmatpush1.msra.mxu0 0.0
    %639 = vmatprep.subr.mxu0 0.0
    %640 = vmatpush1.msra.mxu0 0.0
    %641 = vmatprep.subr.mxu0 0.0
    %642 = vmatpush1.msra.mxu0 0.0
    %643 = vmatprep.subr.mxu0 0.0
    %644 = vmatpush1.msra.mxu0 0.0
    %645 = vmatprep.subr.mxu0 0.0
    %646 = vmatpush1.msra.mxu0 0.0
    %647 = vmatprep.subr.mxu0 0.0
    %648 = vmatpush1.msra.mxu0 0.0
    %649 = vmatprep.subr.mxu0 0.0
    %650 = vmatpush1.msra.mxu0 0.0
    %651 = vmatprep.subr.mxu0 0.0
    %652 = vmatpush1.msra.mxu0 0.0
    %653 = vmatprep.subr.mxu0 0.0
    %654 = vmatpush1.msra.mxu0 0.0
    %655 = vmatprep.subr.mxu0 0.0
    %656 = vmatpush1.msra.mxu0 0.0
    %657 = vmatprep.subr.mxu0 0.0
    %658 = vmatpush1.msra.mxu0 0.0
    %659 = vmatprep.subr.mxu0 0.0
    %660 = vmatpush1.msra.mxu0 0.0
    %661 = vmatprep.subr.mxu0 0.0
    %662 = vmatpush1.msra.mxu0 0.0
    %663 = vmatprep.subr.mxu0 0.0
    %664 = vmatpush1.msra.mxu0 0.0
    %665 = vmatprep.subr.mxu0 0.0
    %666 = vmatpush1.msra.mxu0 0.0
    %667 = vmatprep.subr.mxu0 0.0
    %668 = vmatpush1.msra.mxu0 0.0
    %669 = vmatprep.subr.mxu0 0.0
    %670 = vmatpush1.msra.mxu0 0.0
    %671 = vmatprep.subr.mxu0 0.0
    %672 = vmatpush1.msra.mxu0 0.0
    %673 = vmatprep.mubr.f32.mxu0 0.0
    %674 = vmatmul.mubr.f32.gmra.mrb[0].mxu0 %v523
    %v675 = vpop.f32.mrb[0].mxu0
    %v676 = vadd.f32 0.0, %v675
    %v677 = vpop.f32.mrb[0].mxu0
    %v678 = vadd.f32 0.0, %v677
    %679 = vdwg.mxu0
    %v684 = vrot.slane %v605, 4
    %v685 = vrot.slane %v607, 4
    %v686 = vrot.slane %v676, 4
    %v687 = vrot.slane %v678, 4
    %692 = vst [vmem:[#allocation2] sm:$0xf0] %v684
    %693 = vst [vmem:[#allocation2 + $0x8] sm:$0xf0] %v685
    %694 = vst [vmem:[#allocation2 + $0x10] sm:$0xf0] %v686
    %695 = vst [vmem:[#allocation2 + $0x18] sm:$0xf0] %v687
    %v696 = vld [vmem:[%s5] sm:$0xff]
    %v697 = vld [vmem:[%s6] sm:$0xff]
    %v698 = vld [vmem:[%s7] sm:$0xf]
    %v699 = vld [vmem:[#allocation2] sm:$0xff]
    %v700 = vld [vmem:[#allocation2 + $0x8] sm:$0xff]
    %v701 = vld [vmem:[#allocation2 + $0x10] sm:$0xff]
    %v702 = vld [vmem:[#allocation2 + $0x18] sm:$0xff]
    %704 = vset.pattern.permute.xlu0 0
    %705 = vperm.xlu0 %704, %v696
    %v706 = vpop.permute.xlu0 %705
    %v708 = vmul.f32 %v699, %v706
    %v709 = vmul.f32 %v700, %v706
    %v710 = vmul.f32 %v701, %v706
    %v711 = vmul.f32 %v702, %v706
    %713 = vset.pattern.permute.xlu0 0
    %714 = vperm.xlu0 %713, %v697
    %v715 = vpop.permute.xlu0 %714
    %v717 = vadd.f32 %v708, %v715
    %v718 = vadd.f32 %v709, %v715
    %v719 = vadd.f32 %v710, %v715
    %v720 = vadd.f32 %v711, %v715
    %v721 = vmax.f32 %v717, 0.0
    %v722 = vmax.f32 %v718, 0.0
    %v723 = vmax.f32 %v719, 0.0
    %v724 = vmax.f32 %v720, 0.0
    %725 = vrot.lane.b32.xlu0 %v721, 17
    %v726 = vpop.permute.xlu0 %725
    %727 = vrot.lane.b32.xlu0 %v722, 17
    %v728 = vpop.permute.xlu0 %727
    %729 = vrot.lane.b32.xlu0 %v723, 17
    %v730 = vpop.permute.xlu0 %729
    %731 = vrot.lane.b32.xlu0 %v724, 17
    %v732 = vpop.permute.xlu0 %731
    %v733 = vsel %vm106, %v730, %v732
    %v734 = vsel %vm106, %v728, %v730
    %v735 = vsel %vm106, %v726, %v728
    %v736 = vsel %vm106, %v732, %v726
    %v737 = vld [vmem:[%s1] ss:$8 sm:$0xf]
    %v739 = vlaneseq
    %v740 = vshrl.u32 %v739, 7
    %v741 = vsub.s32 0, %v740
    %v742 = vrot.slane %v737, %v741
    %v743 = vlaneseq
    %v744 = vshrl.u32 %v743, 7
    %v745 = vsub.s32 1, %v744
    %v746 = vrot.slane %v737, %v745
    %v747 = vlaneseq
    %v748 = vshrl.u32 %v747, 7
    %v749 = vsub.s32 2, %v748
    %v750 = vrot.slane %v737, %v749
    %v751 = vlaneseq
    %v752 = vshrl.u32 %v751, 7
    %v753 = vsub.s32 3, %v752
    %v754 = vrot.slane %v737, %v753
    %v759 = vmul.f32 %v736, %v742
    %v760 = vmul.f32 %v735, %v746
    %v761 = vmul.f32 %v734, %v750
    %v762 = vmul.f32 %v733, %v754
    %763 = vst [vmem:[#allocation3] sm:$0xff] %v759
    %764 = vst [vmem:[#allocation3 + $0x8] sm:$0xff] %v760
    %765 = vst [vmem:[#allocation3 + $0x10] sm:$0xff] %v761
    %766 = vst [vmem:[#allocation3 + $0x18] sm:$0xff] %v762
    %767 = vrot.lane.b32.xlu0 %v721, 16
    %v768 = vpop.permute.xlu0 %767
    %769 = vrot.lane.b32.xlu0 %v722, 16
    %v770 = vpop.permute.xlu0 %769
    %771 = vrot.lane.b32.xlu0 %v723, 16
    %v772 = vpop.permute.xlu0 %771
    %773 = vrot.lane.b32.xlu0 %v724, 16
    %v774 = vpop.permute.xlu0 %773
    %v775 = vsel %vm149, %v772, %v774
    %v776 = vsel %vm149, %v770, %v772
    %v777 = vsel %vm149, %v768, %v770
    %v778 = vsel %vm149, %v774, %v768
    %v779 = vld [vmem:[%s154] ss:$8 sm:$0xf]
    %v781 = vlaneseq
    %v782 = vshrl.u32 %v781, 7
    %v783 = vsub.s32 0, %v782
    %v784 = vrot.slane %v779, %v783
    %v785 = vlaneseq
    %v786 = vshrl.u32 %v785, 7
    %v787 = vsub.s32 1, %v786
    %v788 = vrot.slane %v779, %v787
    %v789 = vlaneseq
    %v790 = vshrl.u32 %v789, 7
    %v791 = vsub.s32 2, %v790
    %v792 = vrot.slane %v779, %v791
    %v793 = vlaneseq
    %v794 = vshrl.u32 %v793, 7
    %v795 = vsub.s32 3, %v794
    %v796 = vrot.slane %v779, %v795
    %v801 = vmul.f32 %v778, %v784
    %v802 = vmul.f32 %v777, %v788
    %v803 = vmul.f32 %v776, %v792
    %v804 = vmul.f32 %v775, %v796
    %805 = vst [vmem:[#allocation3 + $0x20] sm:$0xff] %v801
    %806 = vst [vmem:[#allocation3 + $0x28] sm:$0xff] %v802
    %807 = vst [vmem:[#allocation3 + $0x30] sm:$0xff] %v803
    %808 = vst [vmem:[#allocation3 + $0x38] sm:$0xff] %v804
    %809 = vrot.lane.b32.xlu0 %v721, 15
    %v810 = vpop.permute.xlu0 %809
    %811 = vrot.lane.b32.xlu0 %v722, 15
    %v812 = vpop.permute.xlu0 %811
    %813 = vrot.lane.b32.xlu0 %v723, 15
    %v814 = vpop.permute.xlu0 %813
    %815 = vrot.lane.b32.xlu0 %v724, 15
    %v816 = vpop.permute.xlu0 %815
    %v817 = vsel %vm205, %v814, %v816
    %v818 = vsel %vm205, %v812, %v814
    %v819 = vsel %vm205, %v810, %v812
    %v820 = vsel %vm205, %v816, %v810
    %v821 = vld [vmem:[%s210] ss:$8 sm:$0xf]
    %v823 = vlaneseq
    %v824 = vshrl.u32 %v823, 7
    %v825 = vsub.s32 0, %v824
    %v826 = vrot.slane %v821, %v825
    %v827 = vlaneseq
    %v828 = vshrl.u32 %v827, 7
    %v829 = vsub.s32 1, %v828
    %v830 = vrot.slane %v821, %v829
    %v831 = vlaneseq
    %v832 = vshrl.u32 %v831, 7
    %v833 = vsub.s32 2, %v832
    %v834 = vrot.slane %v821, %v833
    %v835 = vlaneseq
    %v836 = vshrl.u32 %v835, 7
    %v837 = vsub.s32 3, %v836
    %v838 = vrot.slane %v821, %v837
    %v843 = vmul.f32 %v820, %v826
    %v844 = vmul.f32 %v819, %v830
    %v845 = vmul.f32 %v818, %v834
    %v846 = vmul.f32 %v817, %v838
    %847 = vst [vmem:[#allocation3 + $0x40] sm:$0xff] %v843
    %848 = vst [vmem:[#allocation3 + $0x48] sm:$0xff] %v844
    %849 = vst [vmem:[#allocation3 + $0x50] sm:$0xff] %v845
    %850 = vst [vmem:[#allocation3 + $0x58] sm:$0xff] %v846
    %851 = vrot.lane.b32.xlu0 %v721, 1
    %v852 = vpop.permute.xlu0 %851
    %853 = vrot.lane.b32.xlu0 %v722, 1
    %v854 = vpop.permute.xlu0 %853
    %855 = vrot.lane.b32.xlu0 %v723, 1
    %v856 = vpop.permute.xlu0 %855
    %857 = vrot.lane.b32.xlu0 %v724, 1
    %v858 = vpop.permute.xlu0 %857
    %v859 = vsel %vm249, %v856, %v858
    %v860 = vsel %vm249, %v854, %v856
    %v861 = vsel %vm249, %v852, %v854
    %v862 = vsel %vm249, %v858, %v852
    %v863 = vld [vmem:[%s254] ss:$8 sm:$0xf]
    %v865 = vlaneseq
    %v866 = vshrl.u32 %v865, 7
    %v867 = vsub.s32 0, %v866
    %v868 = vrot.slane %v863, %v867
    %v869 = vlaneseq
    %v870 = vshrl.u32 %v869, 7
    %v871 = vsub.s32 1, %v870
    %v872 = vrot.slane %v863, %v871
    %v873 = vlaneseq
    %v874 = vshrl.u32 %v873, 7
    %v875 = vsub.s32 2, %v874
    %v876 = vrot.slane %v863, %v875
    %v877 = vlaneseq
    %v878 = vshrl.u32 %v877, 7
    %v879 = vsub.s32 3, %v878
    %v880 = vrot.slane %v863, %v879
    %v885 = vmul.f32 %v862, %v868
    %v886 = vmul.f32 %v861, %v872
    %v887 = vmul.f32 %v860, %v876
    %v888 = vmul.f32 %v859, %v880
    %889 = vst [vmem:[#allocation3 + $0x60] sm:$0xff] %v885
    %890 = vst [vmem:[#allocation3 + $0x68] sm:$0xff] %v886
    %891 = vst [vmem:[#allocation3 + $0x70] sm:$0xff] %v887
    %892 = vst [vmem:[#allocation3 + $0x78] sm:$0xff] %v888
    %893 = vst [vmem:[#allocation3 + $0x80] sm:$0xff] %v721
    %894 = vst [vmem:[#allocation3 + $0x88] sm:$0xff] %v722
    %895 = vst [vmem:[#allocation3 + $0x90] sm:$0xff] %v723
    %896 = vst [vmem:[#allocation3 + $0x98] sm:$0xff] %v724
    %897 = vrot.lane.b32.xlu0 %v721, 127
    %v898 = vpop.permute.xlu0 %897
    %899 = vrot.lane.b32.xlu0 %v722, 127
    %v900 = vpop.permute.xlu0 %899
    %901 = vrot.lane.b32.xlu0 %v723, 127
    %v902 = vpop.permute.xlu0 %901
    %903 = vrot.lane.b32.xlu0 %v724, 127
    %v904 = vpop.permute.xlu0 %903
    %v905 = vsel %vm309, %v902, %v904
    %v906 = vsel %vm309, %v900, %v902
    %v907 = vsel %vm309, %v898, %v900
    %v908 = vsel %vm309, %v904, %v898
    %v909 = vld [vmem:[%s314] ss:$8 sm:$0xf]
    %v911 = vlaneseq
    %v912 = vshrl.u32 %v911, 7
    %v913 = vsub.s32 0, %v912
    %v914 = vrot.slane %v909, %v913
    %v915 = vlaneseq
    %v916 = vshrl.u32 %v915, 7
    %v917 = vsub.s32 1, %v916
    %v918 = vrot.slane %v909, %v917
    %v919 = vlaneseq
    %v920 = vshrl.u32 %v919, 7
    %v921 = vsub.s32 2, %v920
    %v922 = vrot.slane %v909, %v921
    %v923 = vlaneseq
    %v924 = vshrl.u32 %v923, 7
    %v925 = vsub.s32 3, %v924
    %v926 = vrot.slane %v909, %v925
    %v931 = vmul.f32 %v907, %v914
    %v932 = vmul.f32 %v906, %v918
    %v933 = vmul.f32 %v905, %v922
    %v934 = vmul.f32 %v908, %v926
    %935 = vst [vmem:[#allocation3 + $0xa0] sm:$0xff] %v931
    %936 = vst [vmem:[#allocation3 + $0xa8] sm:$0xff] %v932
    %937 = vst [vmem:[#allocation3 + $0xb0] sm:$0xff] %v933
    %938 = vst [vmem:[#allocation3 + $0xb8] sm:$0xff] %v934
    %939 = vrot.lane.b32.xlu0 %v721, 113
    %v940 = vpop.permute.xlu0 %939
    %941 = vrot.lane.b32.xlu0 %v722, 113
    %v942 = vpop.permute.xlu0 %941
    %943 = vrot.lane.b32.xlu0 %v723, 113
    %v944 = vpop.permute.xlu0 %943
    %945 = vrot.lane.b32.xlu0 %v724, 113
    %v946 = vpop.permute.xlu0 %945
    %v947 = vsel %vm365, %v944, %v946
    %v948 = vsel %vm365, %v942, %v944
    %v949 = vsel %vm365, %v940, %v942
    %v950 = vsel %vm365, %v946, %v940
    %v951 = vld [vmem:[%s370] ss:$8 sm:$0xf]
    %v953 = vlaneseq
    %v954 = vshrl.u32 %v953, 7
    %v955 = vsub.s32 0, %v954
    %v956 = vrot.slane %v951, %v955
    %v957 = vlaneseq
    %v958 = vshrl.u32 %v957, 7
    %v959 = vsub.s32 1, %v958
    %v960 = vrot.slane %v951, %v959
    %v961 = vlaneseq
    %v962 = vshrl.u32 %v961, 7
    %v963 = vsub.s32 2, %v962
    %v964 = vrot.slane %v951, %v963
    %v965 = vlaneseq
    %v966 = vshrl.u32 %v965, 7
    %v967 = vsub.s32 3, %v966
    %v968 = vrot.slane %v951, %v967
    %v973 = vmul.f32 %v949, %v956
    %v974 = vmul.f32 %v948, %v960
    %v975 = vmul.f32 %v947, %v964
    %v976 = vmul.f32 %v950, %v968
    %977 = vst [vmem:[#allocation3 + $0xc0] sm:$0xff] %v973
    %978 = vst [vmem:[#allocation3 + $0xc8] sm:$0xff] %v974
    %979 = vst [vmem:[#allocation3 + $0xd0] sm:$0xff] %v975
    %980 = vst [vmem:[#allocation3 + $0xd8] sm:$0xff] %v976
    %981 = vrot.lane.b32.xlu0 %v721, 112
    %v982 = vpop.permute.xlu0 %981
    %983 = vrot.lane.b32.xlu0 %v722, 112
    %v984 = vpop.permute.xlu0 %983
    %985 = vrot.lane.b32.xlu0 %v723, 112
    %v986 = vpop.permute.xlu0 %985
    %987 = vrot.lane.b32.xlu0 %v724, 112
    %v988 = vpop.permute.xlu0 %987
    %v989 = vsel %vm409, %v986, %v988
    %v990 = vsel %vm409, %v984, %v986
    %v991 = vsel %vm409, %v982, %v984
    %v992 = vsel %vm409, %v988, %v982
    %v993 = vld [vmem:[%s414] ss:$8 sm:$0xf]
    %v995 = vlaneseq
    %v996 = vshrl.u32 %v995, 7
    %v997 = vsub.s32 0, %v996
    %v998 = vrot.slane %v993, %v997
    %v999 = vlaneseq
    %v1000 = vshrl.u32 %v999, 7
    %v1001 = vsub.s32 1, %v1000
    %v1002 = vrot.slane %v993, %v1001
    %v1003 = vlaneseq
    %v1004 = vshrl.u32 %v1003, 7
    %v1005 = vsub.s32 2, %v1004
    %v1006 = vrot.slane %v993, %v1005
    %v1007 = vlaneseq
    %v1008 = vshrl.u32 %v1007, 7
    %v1009 = vsub.s32 3, %v1008
    %v1010 = vrot.slane %v993, %v1009
    %v1015 = vmul.f32 %v991, %v998
    %v1016 = vmul.f32 %v990, %v1002
    %v1017 = vmul.f32 %v989, %v1006
    %v1018 = vmul.f32 %v992, %v1010
    %1019 = vst [vmem:[#allocation3 + $0xe0] sm:$0xff] %v1015
    %1020 = vst [vmem:[#allocation3 + $0xe8] sm:$0xff] %v1016
    %1021 = vst [vmem:[#allocation3 + $0xf0] sm:$0xff] %v1017
    %1022 = vst [vmem:[#allocation3 + $0xf8] sm:$0xff] %v1018
    %1023 = vrot.lane.b32.xlu0 %v721, 111
    %v1024 = vpop.permute.xlu0 %1023
    %1025 = vrot.lane.b32.xlu0 %v722, 111
    %v1026 = vpop.permute.xlu0 %1025
    %1027 = vrot.lane.b32.xlu0 %v723, 111
    %v1028 = vpop.permute.xlu0 %1027
    %1029 = vrot.lane.b32.xlu0 %v724, 111
    %v1030 = vpop.permute.xlu0 %1029
    %v1031 = vsel %vm465, %v1028, %v1030
    %v1032 = vsel %vm465, %v1026, %v1028
    %v1033 = vsel %vm465, %v1024, %v1026
    %v1034 = vsel %vm465, %v1030, %v1024
    %v1035 = vld [vmem:[%s470] ss:$8 sm:$0xf]
    %v1037 = vlaneseq
    %v1038 = vshrl.u32 %v1037, 7
    %v1039 = vsub.s32 0, %v1038
    %v1040 = vrot.slane %v1035, %v1039
    %v1041 = vlaneseq
    %v1042 = vshrl.u32 %v1041, 7
    %v1043 = vsub.s32 1, %v1042
    %v1044 = vrot.slane %v1035, %v1043
    %v1045 = vlaneseq
    %v1046 = vshrl.u32 %v1045, 7
    %v1047 = vsub.s32 2, %v1046
    %v1048 = vrot.slane %v1035, %v1047
    %v1049 = vlaneseq
    %v1050 = vshrl.u32 %v1049, 7
    %v1051 = vsub.s32 3, %v1050
    %v1052 = vrot.slane %v1035, %v1051
    %v1057 = vmul.f32 %v1033, %v1040
    %v1058 = vmul.f32 %v1032, %v1044
    %v1059 = vmul.f32 %v1031, %v1048
    %v1060 = vmul.f32 %v1034, %v1052
    %1061 = vst [vmem:[#allocation3 + $0x100] sm:$0xff] %v1057
    %1062 = vst [vmem:[#allocation3 + $0x108] sm:$0xff] %v1058
    %1063 = vst [vmem:[#allocation3 + $0x110] sm:$0xff] %v1059
    %1064 = vst [vmem:[#allocation3 + $0x118] sm:$0xff] %v1060
    %v1065 = vld [vmem:[#allocation3] sm:$0xff]
    %v1066 = vld [vmem:[#allocation3 + $0x8] sm:$0xff]
    %v1067 = vld [vmem:[#allocation3 + $0x10] sm:$0xff]
    %v1068 = vld [vmem:[#allocation3 + $0x18] sm:$0xff]
    %v1069 = vld [vmem:[#allocation3 + $0x20] sm:$0xff]
    %v1070 = vld [vmem:[#allocation3 + $0x28] sm:$0xff]
    %v1071 = vld [vmem:[#allocation3 + $0x30] sm:$0xff]
    %v1072 = vld [vmem:[#allocation3 + $0x38] sm:$0xff]
    %v1073 = vld [vmem:[#allocation3 + $0x40] sm:$0xff]
    %v1074 = vld [vmem:[#allocation3 + $0x48] sm:$0xff]
    %v1075 = vld [vmem:[#allocation3 + $0x50] sm:$0xff]
    %v1076 = vld [vmem:[#allocation3 + $0x58] sm:$0xff]
    %v1077 = vld [vmem:[#allocation3 + $0x60] sm:$0xff]
    %v1078 = vld [vmem:[#allocation3 + $0x68] sm:$0xff]
    %v1079 = vld [vmem:[#allocation3 + $0x70] sm:$0xff]
    %v1080 = vld [vmem:[#allocation3 + $0x78] sm:$0xff]
    %v1081 = vld [vmem:[#allocation3 + $0x80] sm:$0xff]
    %v1082 = vld [vmem:[#allocation3 + $0x88] sm:$0xff]
    %v1083 = vld [vmem:[#allocation3 + $0x90] sm:$0xff]
    %v1084 = vld [vmem:[#allocation3 + $0x98] sm:$0xff]
    %v1085 = vld [vmem:[#allocation3 + $0xa0] sm:$0xff]
    %v1086 = vld [vmem:[#allocation3 + $0xa8] sm:$0xff]
    %v1087 = vld [vmem:[#allocation3 + $0xb0] sm:$0xff]
    %v1088 = vld [vmem:[#allocation3 + $0xb8] sm:$0xff]
    %v1089 = vld [vmem:[#allocation3 + $0xc0] sm:$0xff]
    %v1090 = vld [vmem:[#allocation3 + $0xc8] sm:$0xff]
    %v1091 = vld [vmem:[#allocation3 + $0xd0] sm:$0xff]
    %v1092 = vld [vmem:[#allocation3 + $0xd8] sm:$0xff]
    %v1093 = vld [vmem:[#allocation3 + $0xe0] sm:$0xff]
    %v1094 = vld [vmem:[#allocation3 + $0xe8] sm:$0xff]
    %v1095 = vld [vmem:[#allocation3 + $0xf0] sm:$0xff]
    %v1096 = vld [vmem:[#allocation3 + $0xf8] sm:$0xff]
    %v1097 = vld [vmem:[#allocation3 + $0x100] sm:$0xff]
    %v1098 = vld [vmem:[#allocation3 + $0x108] sm:$0xff]
    %v1099 = vld [vmem:[#allocation3 + $0x110] sm:$0xff]
    %v1100 = vld [vmem:[#allocation3 + $0x118] sm:$0xff]
    %vm1101 = vcmask 588800
    %v1103 = vsel %vm1101, %v698, 0
    %1105 = vmatprep.subr.mxu0 %v1066
    %1106 = vmatpush1.msra.mxu0 %v1065
    %1107 = vmatprep.subr.mxu0 %v1070
    %1108 = vmatpush1.msra.mxu0 %v1069
    %1109 = vmatprep.subr.mxu0 %v1074
    %1110 = vmatpush1.msra.mxu0 %v1073
    %1111 = vmatprep.subr.mxu0 %v1078
    %1112 = vmatpush1.msra.mxu0 %v1077
    %1113 = vmatprep.subr.mxu0 %v1082
    %1114 = vmatpush1.msra.mxu0 %v1081
    %1115 = vmatprep.subr.mxu0 %v1086
    %1116 = vmatpush1.msra.mxu0 %v1085
    %1117 = vmatprep.subr.mxu0 %v1090
    %1118 = vmatpush1.msra.mxu0 %v1089
    %1119 = vmatprep.subr.mxu0 %v1094
    %1120 = vmatpush1.msra.mxu0 %v1093
    %1121 = vmatprep.subr.mxu0 %v1098
    %1122 = vmatpush1.msra.mxu0 %v1097
    %1123 = vmatprep.subr.mxu0 0.0
    %1124 = vmatpush1.msra.mxu0 0.0
    %1125 = vmatprep.subr.mxu0 0.0
    %1126 = vmatpush1.msra.mxu0 0.0
    %1127 = vmatprep.subr.mxu0 0.0
    %1128 = vmatpush1.msra.mxu0 0.0
    %1129 = vmatprep.subr.mxu0 0.0
    %1130 = vmatpush1.msra.mxu0 0.0
    %1131 = vmatprep.subr.mxu0 0.0
    %1132 = vmatpush1.msra.mxu0 0.0
    %1133 = vmatprep.subr.mxu0 0.0
    %1134 = vmatpush1.msra.mxu0 0.0
    %1135 = vmatprep.subr.mxu0 0.0
    %1136 = vmatpush1.msra.mxu0 0.0
    %1137 = vmatprep.subr.mxu0 0.0
    %1138 = vmatpush1.msra.mxu0 0.0
    %1139 = vmatprep.subr.mxu0 0.0
    %1140 = vmatpush1.msra.mxu0 0.0
    %1141 = vmatprep.subr.mxu0 0.0
    %1142 = vmatpush1.msra.mxu0 0.0
    %1143 = vmatprep.subr.mxu0 0.0
    %1144 = vmatpush1.msra.mxu0 0.0
    %1145 = vmatprep.subr.mxu0 0.0
    %1146 = vmatpush1.msra.mxu0 0.0
    %1147 = vmatprep.subr.mxu0 0.0
    %1148 = vmatpush1.msra.mxu0 0.0
    %1149 = vmatprep.subr.mxu0 0.0
    %1150 = vmatpush1.msra.mxu0 0.0
    %1151 = vmatprep.subr.mxu0 0.0
    %1152 = vmatpush1.msra.mxu0 0.0
    %1153 = vmatprep.subr.mxu0 0.0
    %1154 = vmatpush1.msra.mxu0 0.0
    %1155 = vmatprep.subr.mxu0 0.0
    %1156 = vmatpush1.msra.mxu0 0.0
    %1157 = vmatprep.subr.mxu0 0.0
    %1158 = vmatpush1.msra.mxu0 0.0
    %1159 = vmatprep.subr.mxu0 0.0
    %1160 = vmatpush1.msra.mxu0 0.0
    %1161 = vmatprep.subr.mxu0 0.0
    %1162 = vmatpush1.msra.mxu0 0.0
    %1163 = vmatprep.subr.mxu0 0.0
    %1164 = vmatpush1.msra.mxu0 0.0
    %1165 = vmatprep.subr.mxu0 0.0
    %1166 = vmatpush1.msra.mxu0 0.0
    %1167 = vmatprep.subr.mxu0 0.0
    %1168 = vmatpush1.msra.mxu0 0.0
    %1169 = vmatprep.mubr.f32.mxu0 0.0
    %1170 = vmatmul.mubr.f32.gmra.mrb[0].mxu0 %v1103
    %v1171 = vpop.f32.mrb[0].mxu0
    %v1172 = vadd.f32 0.0, %v1171
    %v1173 = vpop.f32.mrb[0].mxu0
    %v1174 = vadd.f32 0.0, %v1173
    %1175 = vdwg.mxu0
    %1176 = vmatprep.subr.mxu0 %v1068
    %1177 = vmatpush1.msra.mxu0 %v1067
    %1178 = vmatprep.subr.mxu0 %v1072
    %1179 = vmatpush1.msra.mxu0 %v1071
    %1180 = vmatprep.subr.mxu0 %v1076
    %1181 = vmatpush1.msra.mxu0 %v1075
    %1182 = vmatprep.subr.mxu0 %v1080
    %1183 = vmatpush1.msra.mxu0 %v1079
    %1184 = vmatprep.subr.mxu0 %v1084
    %1185 = vmatpush1.msra.mxu0 %v1083
    %1186 = vmatprep.subr.mxu0 %v1088
    %1187 = vmatpush1.msra.mxu0 %v1087
    %1188 = vmatprep.subr.mxu0 %v1092
    %1189 = vmatpush1.msra.mxu0 %v1091
    %1190 = vmatprep.subr.mxu0 %v1096
    %1191 = vmatpush1.msra.mxu0 %v1095
    %1192 = vmatprep.subr.mxu0 %v1100
    %1193 = vmatpush1.msra.mxu0 %v1099
    %1194 = vmatprep.subr.mxu0 0.0
    %1195 = vmatpush1.msra.mxu0 0.0
    %1196 = vmatprep.subr.mxu0 0.0
    %1197 = vmatpush1.msra.mxu0 0.0
    %1198 = vmatprep.subr.mxu0 0.0
    %1199 = vmatpush1.msra.mxu0 0.0
    %1200 = vmatprep.subr.mxu0 0.0
    %1201 = vmatpush1.msra.mxu0 0.0
    %1202 = vmatprep.subr.mxu0 0.0
    %1203 = vmatpush1.msra.mxu0 0.0
    %1204 = vmatprep.subr.mxu0 0.0
    %1205 = vmatpush1.msra.mxu0 0.0
    %1206 = vmatprep.subr.mxu0 0.0
    %1207 = vmatpush1.msra.mxu0 0.0
    %1208 = vmatprep.subr.mxu0 0.0
    %1209 = vmatpush1.msra.mxu0 0.0
    %1210 = vmatprep.subr.mxu0 0.0
    %1211 = vmatpush1.msra.mxu0 0.0
    %1212 = vmatprep.subr.mxu0 0.0
    %1213 = vmatpush1.msra.mxu0 0.0
    %1214 = vmatprep.subr.mxu0 0.0
    %1215 = vmatpush1.msra.mxu0 0.0
    %1216 = vmatprep.subr.mxu0 0.0
    %1217 = vmatpush1.msra.mxu0 0.0
    %1218 = vmatprep.subr.mxu0 0.0
    %1219 = vmatpush1.msra.mxu0 0.0
    %1220 = vmatprep.subr.mxu0 0.0
    %1221 = vmatpush1.msra.mxu0 0.0
    %1222 = vmatprep.subr.mxu0 0.0
    %1223 = vmatpush1.msra.mxu0 0.0
    %1224 = vmatprep.subr.mxu0 0.0
    %1225 = vmatpush1.msra.mxu0 0.0
    %1226 = vmatprep.subr.mxu0 0.0
    %1227 = vmatpush1.msra.mxu0 0.0
    %1228 = vmatprep.subr.mxu0 0.0
    %1229 = vmatpush1.msra.mxu0 0.0
    %1230 = vmatprep.subr.mxu0 0.0
    %1231 = vmatpush1.msra.mxu0 0.0
    %1232 = vmatprep.subr.mxu0 0.0
    %1233 = vmatpush1.msra.mxu0 0.0
    %1234 = vmatprep.subr.mxu0 0.0
    %1235 = vmatpush1.msra.mxu0 0.0
    %1236 = vmatprep.subr.mxu0 0.0
    %1237 = vmatpush1.msra.mxu0 0.0
    %1238 = vmatprep.subr.mxu0 0.0
    %1239 = vmatpush1.msra.mxu0 0.0
    %1240 = vmatprep.mubr.f32.mxu0 0.0
    %1241 = vmatmul.mubr.f32.gmra.mrb[0].mxu0 %v1103
    %v1242 = vpop.f32.mrb[0].mxu0
    %v1243 = vadd.f32 0.0, %v1242
    %v1244 = vpop.f32.mrb[0].mxu0
    %v1245 = vadd.f32 0.0, %v1244
    %1246 = vdwg.mxu0
    %1247 = vst [vmem:[#allocation2 + $0x20] sm:$0xf] %v1172
    %1248 = vst [vmem:[#allocation2 + $0x28] sm:$0xf] %v1174
    %1249 = vst [vmem:[#allocation2 + $0x30] sm:$0xf] %v1243
    %1250 = vst [vmem:[#allocation2 + $0x38] sm:$0xf] %v1245
    %v1251 = vld [vmem:[%s8] sm:$0xff]
    %v1252 = vld [vmem:[%s8 + $0x8] sm:$0xf]
    %v1253 = vld [vmem:[%s9] sm:$0xff]
    %v1254 = vld [vmem:[%s9 + $0x8] sm:$0xf]
    %v1255 = vld [vmem:[%s10] sm:$0x3f]
    %v1256 = vld [vmem:[#allocation4] sm:$0xff]
    %v1257 = vld [vmem:[#allocation4 + $0x8] sm:$0xff]
    %v1258 = vld [vmem:[#allocation4 + $0x10] sm:$0xff]
    %v1259 = vld [vmem:[#allocation4 + $0x18] sm:$0xff]
    %v1260 = vld [vmem:[#allocation4 + $0x20] sm:$0xff]
    %v1261 = vld [vmem:[#allocation4 + $0x28] sm:$0xff]
    %v1262 = vld [vmem:[#allocation4 + $0x30] sm:$0xff]
    %v1263 = vld [vmem:[#allocation4 + $0x38] sm:$0xff]
    %v1264 = vld [vmem:[#allocation4 + $0x40] sm:$0xff]
    %v1265 = vld [vmem:[#allocation4 + $0x48] sm:$0xff]
    %v1266 = vld [vmem:[#allocation4 + $0x50] sm:$0xff]
    %v1267 = vld [vmem:[#allocation4 + $0x58] sm:$0xff]
    %v1268 = vld [vmem:[#allocation4 + $0x60] sm:$0xff]
    %v1269 = vld [vmem:[#allocation4 + $0x68] sm:$0xff]
    %v1270 = vld [vmem:[#allocation4 + $0x70] sm:$0xff]
    %v1271 = vld [vmem:[#allocation4 + $0x78] sm:$0xff]
    %v1272 = vld [vmem:[#allocation4 + $0x80] sm:$0xff]
    %v1273 = vld [vmem:[#allocation4 + $0x88] sm:$0xff]
    %v1274 = vld [vmem:[#allocation4 + $0x90] sm:$0xff]
    %v1275 = vld [vmem:[#allocation4 + $0x98] sm:$0xff]
    %v1276 = vld [vmem:[#allocation4 + $0xa0] sm:$0xff]
    %v1277 = vld [vmem:[#allocation4 + $0xa8] sm:$0xff]
    %v1278 = vld [vmem:[#allocation4 + $0xb0] sm:$0xff]
    %v1279 = vld [vmem:[#allocation4 + $0xb8] sm:$0xff]
    %v1280 = vld [vmem:[#allocation4 + $0xc0] sm:$0xff]
    %v1281 = vld [vmem:[#allocation4 + $0xc8] sm:$0xff]
    %v1282 = vld [vmem:[#allocation4 + $0xd0] sm:$0xff]
    %v1283 = vld [vmem:[#allocation4 + $0xd8] sm:$0xff]
    %v1284 = vld [vmem:[#allocation4 + $0xe0] sm:$0xff]
    %v1285 = vld [vmem:[#allocation4 + $0xe8] sm:$0xff]
    %v1286 = vld [vmem:[#allocation4 + $0xf0] sm:$0xff]
    %v1287 = vld [vmem:[#allocation4 + $0xf8] sm:$0xff]
    %v1288 = vld [vmem:[#allocation4 + $0x100] sm:$0xff]
    %v1289 = vld [vmem:[#allocation4 + $0x108] sm:$0xff]
    %v1290 = vld [vmem:[#allocation4 + $0x110] sm:$0xff]
    %v1291 = vld [vmem:[#allocation4 + $0x118] sm:$0xff]
    %v1292 = vld [vmem:[#allocation4 + $0x120] sm:$0xff]
    %v1293 = vld [vmem:[#allocation4 + $0x128] sm:$0xff]
    %v1294 = vld [vmem:[#allocation4 + $0x130] sm:$0xff]
    %v1295 = vld [vmem:[#allocation4 + $0x138] sm:$0xff]
    %v1296 = vld [vmem:[#allocation4 + $0x140] sm:$0xff]
    %v1297 = vld [vmem:[#allocation4 + $0x148] sm:$0xff]
    %v1298 = vld [vmem:[#allocation4 + $0x150] sm:$0xff]
    %v1299 = vld [vmem:[#allocation4 + $0x158] sm:$0xff]
    %v1300 = vld [vmem:[#allocation4 + $0x160] sm:$0xff]
    %v1301 = vld [vmem:[#allocation4 + $0x168] sm:$0xff]
    %v1302 = vld [vmem:[#allocation4 + $0x170] sm:$0xff]
    %v1303 = vld [vmem:[#allocation4 + $0x178] sm:$0xff]
    %v1304 = vld [vmem:[#allocation4 + $0x180] sm:$0xff]
    %v1305 = vld [vmem:[#allocation4 + $0x188] sm:$0xff]
    %v1306 = vld [vmem:[#allocation4 + $0x190] sm:$0xff]
    %v1307 = vld [vmem:[#allocation4 + $0x198] sm:$0xff]
    %v1308 = vld [vmem:[#allocation4 + $0x1a0] sm:$0xff]
    %v1309 = vld [vmem:[#allocation4 + $0x1a8] sm:$0xff]
    %v1310 = vld [vmem:[#allocation4 + $0x1b0] sm:$0xff]
    %v1311 = vld [vmem:[#allocation4 + $0x1b8] sm:$0xff]
    %v1312 = vld [vmem:[#allocation4 + $0x1c0] sm:$0xff]
    %v1313 = vld [vmem:[#allocation4 + $0x1c8] sm:$0xff]
    %v1314 = vld [vmem:[#allocation4 + $0x1d0] sm:$0xff]
    %v1315 = vld [vmem:[#allocation4 + $0x1d8] sm:$0xff]
    %v1316 = vld [vmem:[#allocation4 + $0x1e0] sm:$0xff]
    %v1317 = vld [vmem:[#allocation4 + $0x1e8] sm:$0xff]
    %v1318 = vld [vmem:[#allocation4 + $0x1f0] sm:$0xff]
    %v1319 = vld [vmem:[#allocation4 + $0x1f8] sm:$0xff]
    %v1320 = vld [vmem:[#allocation2] sm:$0xff]
    %v1321 = vld [vmem:[#allocation2 + $0x8] sm:$0xff]
    %v1322 = vld [vmem:[#allocation2 + $0x10] sm:$0xff]
    %v1323 = vld [vmem:[#allocation2 + $0x18] sm:$0xff]
    %v1324 = vld [vmem:[#allocation2 + $0x20] sm:$0xf]
    %v1325 = vld [vmem:[#allocation2 + $0x28] sm:$0xf]
    %v1326 = vld [vmem:[#allocation2 + $0x30] sm:$0xf]
    %v1327 = vld [vmem:[#allocation2 + $0x38] sm:$0xf]
    %1329 = vset.pattern.permute.xlu0 0
    %1330 = vperm.xlu0 %1329, %v1251
    %v1331 = vpop.permute.xlu0 %1330
    %1334 = vset.pattern.permute.xlu0 0
    %1335 = vperm.xlu0 %1334, %v1252
    %v1336 = vpop.permute.xlu0 %1335
    %v1338 = vmul.f32 %v1320, %v1331
    %v1339 = vmul.f32 %v1321, %v1331
    %v1340 = vmul.f32 %v1322, %v1331
    %v1341 = vmul.f32 %v1323, %v1331
    %v1342 = vmul.f32 %v1324, %v1336
    %v1343 = vmul.f32 %v1325, %v1336
    %v1344 = vmul.f32 %v1326, %v1336
    %v1345 = vmul.f32 %v1327, %v1336
    %1347 = vset.pattern.permute.xlu0 0
    %1348 = vperm.xlu0 %1347, %v1253
    %v1349 = vpop.permute.xlu0 %1348
    %1352 = vset.pattern.permute.xlu0 0
    %1353 = vperm.xlu0 %1352, %v1254
    %v1354 = vpop.permute.xlu0 %1353
    %v1356 = vadd.f32 %v1338, %v1349
    %v1357 = vadd.f32 %v1339, %v1349
    %v1358 = vadd.f32 %v1340, %v1349
    %v1359 = vadd.f32 %v1341, %v1349
    %v1360 = vadd.f32 %v1342, %v1354
    %v1361 = vadd.f32 %v1343, %v1354
    %v1362 = vadd.f32 %v1344, %v1354
    %v1363 = vadd.f32 %v1345, %v1354
    %v1364 = vmax.f32 %v1356, 0.0
    %v1365 = vmax.f32 %v1357, 0.0
    %v1366 = vmax.f32 %v1358, 0.0
    %v1367 = vmax.f32 %v1359, 0.0
    %v1368 = vmax.f32 %v1360, 0.0
    %v1369 = vmax.f32 %v1361, 0.0
    %v1370 = vmax.f32 %v1362, 0.0
    %v1371 = vmax.f32 %v1363, 0.0
    %vm1372 = vcmask 97280
    %v1374 = vsel %vm1372, %v1255, 0
    %v1377 = vsel %vm525, %v1368, 0
    %v1380 = vsel %vm525, %v1369, 0
    %v1383 = vsel %vm525, %v1370, 0
    %v1386 = vsel %vm525, %v1371, 0
    %1388 = vmatprep.subr.mxu0 %v1365
    %1389 = vmatpush1.msra.mxu0 %v1364
    %1390 = vmatprep.subr.mxu0 %v1380
    %1391 = vmatpush1.msra.mxu0 %v1377
    %1392 = vmatprep.subr.mxu0 0.0
    %1393 = vmatpush1.msra.mxu0 0.0
    %1394 = vmatprep.subr.mxu0 0.0
    %1395 = vmatpush1.msra.mxu0 0.0
    %1396 = vmatprep.subr.mxu0 0.0
    %1397 = vmatpush1.msra.mxu0 0.0
    %1398 = vmatprep.subr.mxu0 0.0
    %1399 = vmatpush1.msra.mxu0 0.0
    %1400 = vmatprep.subr.mxu0 0.0
    %1401 = vmatpush1.msra.mxu0 0.0
    %1402 = vmatprep.subr.mxu0 0.0
    %1403 = vmatpush1.msra.mxu0 0.0
    %1404 = vmatprep.subr.mxu0 0.0
    %1405 = vmatpush1.msra.mxu0 0.0
    %1406 = vmatprep.subr.mxu0 0.0
    %1407 = vmatpush1.msra.mxu0 0.0
    %1408 = vmatprep.subr.mxu0 0.0
    %1409 = vmatpush1.msra.mxu0 0.0
    %1410 = vmatprep.subr.mxu0 0.0
    %1411 = vmatpush1.msra.mxu0 0.0
    %1412 = vmatprep.subr.mxu0 0.0
    %1413 = vmatpush1.msra.mxu0 0.0
    %1414 = vmatprep.subr.mxu0 0.0
    %1415 = vmatpush1.msra.mxu0 0.0
    %1416 = vmatprep.subr.mxu0 0.0
    %1417 = vmatpush1.msra.mxu0 0.0
    %1418 = vmatprep.subr.mxu0 0.0
    %1419 = vmatpush1.msra.mxu0 0.0
    %1420 = vmatprep.subr.mxu0 0.0
    %1421 = vmatpush1.msra.mxu0 0.0
    %1422 = vmatprep.subr.mxu0 0.0
    %1423 = vmatpush1.msra.mxu0 0.0
    %1424 = vmatprep.subr.mxu0 0.0
    %1425 = vmatpush1.msra.mxu0 0.0
    %1426 = vmatprep.subr.mxu0 0.0
    %1427 = vmatpush1.msra.mxu0 0.0
    %1428 = vmatprep.subr.mxu0 0.0
    %1429 = vmatpush1.msra.mxu0 0.0
    %1430 = vmatprep.subr.mxu0 0.0
    %1431 = vmatpush1.msra.mxu0 0.0
    %1432 = vmatprep.subr.mxu0 0.0
    %1433 = vmatpush1.msra.mxu0 0.0
    %1434 = vmatprep.subr.mxu0 0.0
    %1435 = vmatpush1.msra.mxu0 0.0
    %1436 = vmatprep.subr.mxu0 0.0
    %1437 = vmatpush1.msra.mxu0 0.0
    %1438 = vmatprep.subr.mxu0 0.0
    %1439 = vmatpush1.msra.mxu0 0.0
    %1440 = vmatprep.subr.mxu0 0.0
    %1441 = vmatpush1.msra.mxu0 0.0
    %1442 = vmatprep.subr.mxu0 0.0
    %1443 = vmatpush1.msra.mxu0 0.0
    %1444 = vmatprep.subr.mxu0 0.0
    %1445 = vmatpush1.msra.mxu0 0.0
    %1446 = vmatprep.subr.mxu0 0.0
    %1447 = vmatpush1.msra.mxu0 0.0
    %1448 = vmatprep.subr.mxu0 0.0
    %1449 = vmatpush1.msra.mxu0 0.0
    %1450 = vmatprep.subr.mxu0 0.0
    %1451 = vmatpush1.msra.mxu0 0.0
    %1452 = vmatprep.mubr.f32.mxu0 0.0
    %1453 = vmatmul.mubr.f32.gmra.mrb[0].mxu0 %v1374
    %v1454 = vpop.f32.mrb[0].mxu0
    %v1455 = vadd.f32 0.0, %v1454
    %v1456 = vpop.f32.mrb[0].mxu0
    %v1457 = vadd.f32 0.0, %v1456
    %1458 = vdwg.mxu0
    %1459 = vmatprep.subr.mxu0 %v1367
    %1460 = vmatpush1.msra.mxu0 %v1366
    %1461 = vmatprep.subr.mxu0 %v1386
    %1462 = vmatpush1.msra.mxu0 %v1383
    %1463 = vmatprep.subr.mxu0 0.0
    %1464 = vmatpush1.msra.mxu0 0.0
    %1465 = vmatprep.subr.mxu0 0.0
    %1466 = vmatpush1.msra.mxu0 0.0
    %1467 = vmatprep.subr.mxu0 0.0
    %1468 = vmatpush1.msra.mxu0 0.0
    %1469 = vmatprep.subr.mxu0 0.0
    %1470 = vmatpush1.msra.mxu0 0.0
    %1471 = vmatprep.subr.mxu0 0.0
    %1472 = vmatpush1.msra.mxu0 0.0
    %1473 = vmatprep.subr.mxu0 0.0
    %1474 = vmatpush1.msra.mxu0 0.0
    %1475 = vmatprep.subr.mxu0 0.0
    %1476 = vmatpush1.msra.mxu0 0.0
    %1477 = vmatprep.subr.mxu0 0.0
    %1478 = vmatpush1.msra.mxu0 0.0
    %1479 = vmatprep.subr.mxu0 0.0
    %1480 = vmatpush1.msra.mxu0 0.0
    %1481 = vmatprep.subr.mxu0 0.0
    %1482 = vmatpush1.msra.mxu0 0.0
    %1483 = vmatprep.subr.mxu0 0.0
    %1484 = vmatpush1.msra.mxu0 0.0
    %1485 = vmatprep.subr.mxu0 0.0
    %1486 = vmatpush1.msra.mxu0 0.0
    %1487 = vmatprep.subr.mxu0 0.0
    %1488 = vmatpush1.msra.mxu0 0.0
    %1489 = vmatprep.subr.mxu0 0.0
    %1490 = vmatpush1.msra.mxu0 0.0
    %1491 = vmatprep.subr.mxu0 0.0
    %1492 = vmatpush1.msra.mxu0 0.0
    %1493 = vmatprep.subr.mxu0 0.0
    %1494 = vmatpush1.msra.mxu0 0.0
    %1495 = vmatprep.subr.mxu0 0.0
    %1496 = vmatpush1.msra.mxu0 0.0
    %1497 = vmatprep.subr.mxu0 0.0
    %1498 = vmatpush1.msra.mxu0 0.0
    %1499 = vmatprep.subr.mxu0 0.0
    %1500 = vmatpush1.msra.mxu0 0.0
    %1501 = vmatprep.subr.mxu0 0.0
    %1502 = vmatpush1.msra.mxu0 0.0
    %1503 = vmatprep.subr.mxu0 0.0
    %1504 = vmatpush1.msra.mxu0 0.0
    %1505 = vmatprep.subr.mxu0 0.0
    %1506 = vmatpush1.msra.mxu0 0.0
    %1507 = vmatprep.subr.mxu0 0.0
    %1508 = vmatpush1.msra.mxu0 0.0
    %1509 = vmatprep.subr.mxu0 0.0
    %1510 = vmatpush1.msra.mxu0 0.0
    %1511 = vmatprep.subr.mxu0 0.0
    %1512 = vmatpush1.msra.mxu0 0.0
    %1513 = vmatprep.subr.mxu0 0.0
    %1514 = vmatpush1.msra.mxu0 0.0
    %1515 = vmatprep.subr.mxu0 0.0
    %1516 = vmatpush1.msra.mxu0 0.0
    %1517 = vmatprep.subr.mxu0 0.0
    %1518 = vmatpush1.msra.mxu0 0.0
    %1519 = vmatprep.subr.mxu0 0.0
    %1520 = vmatpush1.msra.mxu0 0.0
    %1521 = vmatprep.subr.mxu0 0.0
    %1522 = vmatpush1.msra.mxu0 0.0
    %1523 = vmatprep.mubr.f32.mxu0 0.0
    %1524 = vmatmul.mubr.f32.gmra.mrb[0].mxu0 %v1374
    %v1525 = vpop.f32.mrb[0].mxu0
    %v1526 = vadd.f32 0.0, %v1525
    %v1527 = vpop.f32.mrb[0].mxu0
    %v1528 = vadd.f32 0.0, %v1527
    %1529 = vdwg.mxu0
    %1530 = vmatprep.subr.mxu0 0.0
    %1531 = vmatpush1.msra.mxu0 %v1256
    %1532 = vmatprep.subr.mxu0 0.0
    %1533 = vmatpush1.msra.mxu0 %v1257
    %1534 = vmatprep.subr.mxu0 0.0
    %1535 = vmatpush1.msra.mxu0 %v1258
    %1536 = vmatprep.subr.mxu0 0.0
    %1537 = vmatpush1.msra.mxu0 %v1259
    %1538 = vmatprep.subr.mxu0 0.0
    %1539 = vmatpush1.msra.mxu0 %v1260
    %1540 = vmatprep.subr.mxu0 0.0
    %1541 = vmatpush1.msra.mxu0 %v1261
    %1542 = vmatprep.subr.mxu0 0.0
    %1543 = vmatpush1.msra.mxu0 %v1262
    %1544 = vmatprep.subr.mxu0 0.0
    %1545 = vmatpush1.msra.mxu0 %v1263
    %1546 = vmatprep.subr.mxu0 0.0
    %1547 = vmatpush1.msra.mxu0 %v1264
    %1548 = vmatprep.subr.mxu0 0.0
    %1549 = vmatpush1.msra.mxu0 %v1265
    %1550 = vmatprep.subr.mxu0 0.0
    %1551 = vmatpush1.msra.mxu0 %v1266
    %1552 = vmatprep.subr.mxu0 0.0
    %1553 = vmatpush1.msra.mxu0 %v1267
    %1554 = vmatprep.subr.mxu0 0.0
    %1555 = vmatpush1.msra.mxu0 %v1268
    %1556 = vmatprep.subr.mxu0 0.0
    %1557 = vmatpush1.msra.mxu0 %v1269
    %1558 = vmatprep.subr.mxu0 0.0
    %1559 = vmatpush1.msra.mxu0 %v1270
    %1560 = vmatprep.subr.mxu0 0.0
    %1561 = vmatpush1.msra.mxu0 %v1271
    %1562 = vmatprep.subr.mxu0 0.0
    %1563 = vmatpush1.msra.mxu0 %v1272
    %1564 = vmatprep.subr.mxu0 0.0
    %1565 = vmatpush1.msra.mxu0 %v1273
    %1566 = vmatprep.subr.mxu0 0.0
    %1567 = vmatpush1.msra.mxu0 %v1274
    %1568 = vmatprep.subr.mxu0 0.0
    %1569 = vmatpush1.msra.mxu0 %v1275
    %1570 = vmatprep.subr.mxu0 0.0
    %1571 = vmatpush1.msra.mxu0 %v1276
    %1572 = vmatprep.subr.mxu0 0.0
    %1573 = vmatpush1.msra.mxu0 %v1277
    %1574 = vmatprep.subr.mxu0 0.0
    %1575 = vmatpush1.msra.mxu0 %v1278
    %1576 = vmatprep.subr.mxu0 0.0
    %1577 = vmatpush1.msra.mxu0 %v1279
    %1578 = vmatprep.subr.mxu0 0.0
    %1579 = vmatpush1.msra.mxu0 %v1280
    %1580 = vmatprep.subr.mxu0 0.0
    %1581 = vmatpush1.msra.mxu0 %v1281
    %1582 = vmatprep.subr.mxu0 0.0
    %1583 = vmatpush1.msra.mxu0 %v1282
    %1584 = vmatprep.subr.mxu0 0.0
    %1585 = vmatpush1.msra.mxu0 %v1283
    %1586 = vmatprep.subr.mxu0 0.0
    %1587 = vmatpush1.msra.mxu0 %v1284
    %1588 = vmatprep.subr.mxu0 0.0
    %1589 = vmatpush1.msra.mxu0 %v1285
    %1590 = vmatprep.subr.mxu0 0.0
    %1591 = vmatpush1.msra.mxu0 %v1286
    %1592 = vmatprep.subr.mxu0 0.0
    %1593 = vmatpush1.msra.mxu0 %v1287
    %1594 = vmatprep.mubr.f32.mxu0 %v1457
    %1595 = vmatmul.mubr.f32.gmra.mrb[0].mxu0 %v1455
    %v1596 = vpop.f32.mrb[0].mxu0
    %v1597 = vadd.f32 0.0, %v1596
    %v1598 = vpop.f32.mrb[0].mxu0
    %1599 = vdwg.mxu0
    %1600 = vmatprep.subr.mxu0 0.0
    %1601 = vmatpush1.msra.mxu0 %v1288
    %1602 = vmatprep.subr.mxu0 0.0
    %1603 = vmatpush1.msra.mxu0 %v1289
    %1604 = vmatprep.subr.mxu0 0.0
    %1605 = vmatpush1.msra.mxu0 %v1290
    %1606 = vmatprep.subr.mxu0 0.0
    %1607 = vmatpush1.msra.mxu0 %v1291
    %1608 = vmatprep.subr.mxu0 0.0
    %1609 = vmatpush1.msra.mxu0 %v1292
    %1610 = vmatprep.subr.mxu0 0.0
    %1611 = vmatpush1.msra.mxu0 %v1293
    %1612 = vmatprep.subr.mxu0 0.0
    %1613 = vmatpush1.msra.mxu0 %v1294
    %1614 = vmatprep.subr.mxu0 0.0
    %1615 = vmatpush1.msra.mxu0 %v1295
    %1616 = vmatprep.subr.mxu0 0.0
    %1617 = vmatpush1.msra.mxu0 %v1296
    %1618 = vmatprep.subr.mxu0 0.0
    %1619 = vmatpush1.msra.mxu0 %v1297
    %1620 = vmatprep.subr.mxu0 0.0
    %1621 = vmatpush1.msra.mxu0 %v1298
    %1622 = vmatprep.subr.mxu0 0.0
    %1623 = vmatpush1.msra.mxu0 %v1299
    %1624 = vmatprep.subr.mxu0 0.0
    %1625 = vmatpush1.msra.mxu0 %v1300
    %1626 = vmatprep.subr.mxu0 0.0
    %1627 = vmatpush1.msra.mxu0 %v1301
    %1628 = vmatprep.subr.mxu0 0.0
    %1629 = vmatpush1.msra.mxu0 %v1302
    %1630 = vmatprep.subr.mxu0 0.0
    %1631 = vmatpush1.msra.mxu0 %v1303
    %1632 = vmatprep.subr.mxu0 0.0
    %1633 = vmatpush1.msra.mxu0 %v1304
    %1634 = vmatprep.subr.mxu0 0.0
    %1635 = vmatpush1.msra.mxu0 %v1305
    %1636 = vmatprep.subr.mxu0 0.0
    %1637 = vmatpush1.msra.mxu0 %v1306
    %1638 = vmatprep.subr.mxu0 0.0
    %1639 = vmatpush1.msra.mxu0 %v1307
    %1640 = vmatprep.subr.mxu0 0.0
    %1641 = vmatpush1.msra.mxu0 %v1308
    %1642 = vmatprep.subr.mxu0 0.0
    %1643 = vmatpush1.msra.mxu0 %v1309
    %1644 = vmatprep.subr.mxu0 0.0
    %1645 = vmatpush1.msra.mxu0 %v1310
    %1646 = vmatprep.subr.mxu0 0.0
    %1647 = vmatpush1.msra.mxu0 %v1311
    %1648 = vmatprep.subr.mxu0 0.0
    %1649 = vmatpush1.msra.mxu0 %v1312
    %1650 = vmatprep.subr.mxu0 0.0
    %1651 = vmatpush1.msra.mxu0 %v1313
    %1652 = vmatprep.subr.mxu0 0.0
    %1653 = vmatpush1.msra.mxu0 %v1314
    %1654 = vmatprep.subr.mxu0 0.0
    %1655 = vmatpush1.msra.mxu0 %v1315
    %1656 = vmatprep.subr.mxu0 0.0
    %1657 = vmatpush1.msra.mxu0 %v1316
    %1658 = vmatprep.subr.mxu0 0.0
    %1659 = vmatpush1.msra.mxu0 %v1317
    %1660 = vmatprep.subr.mxu0 0.0
    %1661 = vmatpush1.msra.mxu0 %v1318
    %1662 = vmatprep.subr.mxu0 0.0
    %1663 = vmatpush1.msra.mxu0 %v1319
    %1664 = vmatprep.mubr.f32.mxu0 %v1528
    %1665 = vmatmul.mubr.f32.gmra.mrb[0].mxu0 %v1526
    %v1666 = vpop.f32.mrb[0].mxu0
    %v1667 = vadd.f32 %v1597, %v1666
    %v1668 = vpop.f32.mrb[0].mxu0
    %1669 = vdwg.mxu0
    %1670 = vst [vmem:[%s12] sm:$0x3f] %v1667
    // Predicated region
    $region54: #{make_blocks_forward.2} parent=1 // pred_check
      _
    $region55: #{make_blocks_forward.2} parent=1 // pred_check_branch
      %1672 = sbr.rel (0) target = $region57
    $region56: #{make_blocks_forward.2} parent=1 // pred_region
      _
    $region57: #{make_blocks_forward.2} parent=1 // pred_fallthru
      _
    // Predicated region
    $region58: #{make_blocks_forward.2} parent=1 // pred_check
      _
    $region59: #{make_blocks_forward.2} parent=1 // pred_check_branch
      %1674 = sbr.rel (0) target = $region61
    $region60: #{make_blocks_forward.2} parent=1 // pred_region
      _
    $region61: #{make_blocks_forward.2} parent=1 // pred_fallthru
      _
    %1675 = vsyncpa [#allocation5], 1

</llo_original>
